<compile_context>
chip_gen: v7x
topology: tpu7x:2x2x1
jax: 0.10.0
libtpu: 0.0.40
codegen_flags: <defaults>
</compile_context>

<pallas_src>
import functools

import jax
import jax.numpy as jnp
from jax.experimental import pallas as pl
from jax.experimental.pallas import tpu as pltpu

_VMEM_LIMIT_BYTES = 32 * 1024 * 1024  # safe on v5e/v6e (128 MiB) and v7x (64 MiB)


# --------------------------- fused single-pass kernel ---------------------------

def cbam_fused_kernel(x_ref, w3_ref, b3_ref, w4_ref, b4_ref, w1_ref, w2_ref,
                      o_ref, *, hw_total):
    """One image per grid step: stats + channel MLP + apply + spatial MLP."""
    x = x_ref[0].astype(jnp.float32)                               # (C, HW)

    # Channel statistics over the spatial (lane) axis.
    avg = jnp.sum(x, axis=1, keepdims=True) * (1.0 / hw_total)     # (C, 1)
    mx = jnp.max(x, axis=1, keepdims=True)                         # (C, 1)

    # Channel MLP (fc3/fc4, PyTorch weight layout: y = W @ v + b).
    w3 = w3_ref[...]; b3 = b3_ref[...]
    w4 = w4_ref[...]; b4 = b4_ref[...]
    h_a = jnp.maximum(jnp.dot(w3, avg, preferred_element_type=jnp.float32) + b3, 0.0)
    h_m = jnp.maximum(jnp.dot(w3, mx, preferred_element_type=jnp.float32) + b3, 0.0)
    y = (jnp.dot(w4, h_a, preferred_element_type=jnp.float32)
         + jnp.dot(w4, h_m, preferred_element_type=jnp.float32)
         + 2.0 * b4)                                               # (C, 1)
    chn_att = jax.nn.sigmoid(y)

    x1 = x * chn_att                                               # channel attention

    # Spatial 1x1-conv MLP. fc1/fc2 are bias-free so the "max" branch equals the
    # "avg" branch; w2_ref is pre-scaled by 2 => spa_att = sigmoid(spa).
    h = jnp.maximum(jnp.dot(w1_ref[...], x1,
                            preferred_element_type=jnp.float32), 0.0)   # (Cr, HW)
    spa = jnp.dot(w2_ref[...], h, preferred_element_type=jnp.float32)   # (C, HW)
    o_ref[0] = (x1 * jax.nn.sigmoid(spa)).astype(o_ref.dtype)


# ----------------------- two-pass fallback (large HW) ---------------------------

def cbam_stats_kernel(x_ref, w3_ref, b3_ref, w4_ref, b4_ref, att_ref,
                      sum_ref, max_ref, *, hw_total, tile, needs_mask):
    """Accumulate per-channel sum/max over HW tiles; finalize with the channel MLP."""
    t = pl.program_id(1)

    @pl.when(t == 0)
    def _init():
        sum_ref[...] = jnp.zeros_like(sum_ref)
        max_ref[...] = jnp.full_like(max_ref, -jnp.inf)

    x = x_ref[0].astype(jnp.float32)                               # (C, T)
    if needs_mask:  # static: only emitted when HW was zero-padded
        col = jax.lax.broadcasted_iota(jnp.int32, x.shape, 1) + t * tile
        valid = col < hw_total
        xs = jnp.where(valid, x, 0.0)
        xm = jnp.where(valid, x, -jnp.inf)
    else:
        xs = xm = x
    sum_ref[...] += jnp.sum(xs, axis=1, keepdims=True)
    max_ref[...] = jnp.maximum(max_ref[...], jnp.max(xm, axis=1, keepdims=True))

    @pl.when(t == pl.num_programs(1) - 1)
    def _finalize():
        avg = sum_ref[...] * (1.0 / hw_total)                      # true mean over H*W
        mx = max_ref[...]
        w3 = w3_ref[...]; b3 = b3_ref[...]
        w4 = w4_ref[...]; b4 = b4_ref[...]
        h_a = jnp.maximum(jnp.dot(w3, avg, preferred_element_type=jnp.float32) + b3, 0.0)
        h_m = jnp.maximum(jnp.dot(w3, mx, preferred_element_type=jnp.float32) + b3, 0.0)
        y = (jnp.dot(w4, h_a, preferred_element_type=jnp.float32)
             + jnp.dot(w4, h_m, preferred_element_type=jnp.float32)
             + 2.0 * b4)
        att_ref[0] = jax.nn.sigmoid(y).astype(att_ref.dtype)       # (C, 1)


def cbam_apply_kernel(x_ref, att_ref, w1_ref, w2_ref, o_ref):
    x = x_ref[0].astype(jnp.float32)                               # (C, T)
    x1 = x * att_ref[0]                                            # (C, 1) broadcast
    h = jnp.maximum(jnp.dot(w1_ref[...], x1,
                            preferred_element_type=jnp.float32), 0.0)
    spa = jnp.dot(w2_ref[...], h, preferred_element_type=jnp.float32)
    o_ref[0] = (x1 * jax.nn.sigmoid(spa)).astype(o_ref.dtype)      # w2 pre-scaled by 2


# ----------------------------------- wrappers -----------------------------------

def _pick_hw_tile(hw, c, budget_bytes):
    """Largest lane-dense (multiple-of-128) HW tile such that ~8 live (C, T) f32
    slabs stay under the budget. Returns (tile, padded_hw)."""
    max_t = (budget_bytes // 8) // (c * 4)
    max_t = max(128, (max_t // 128) * 128)
    if hw <= max_t:
        return hw, hw                              # single full-HW tile
    for cand in range(max_t, 127, -128):           # divisor of HW, multiple of 128
        if hw % cand == 0:
            return cand, hw
    hw_pad = pl.cdiv(hw, max_t) * max_t            # no divisor: pad + mask tail
    return max_t, hw_pad


def _cbam_fused(xf, w3, b3, w4, b4, w1, w2x2, Cr):
    B, C, HW = xf.shape
    return pl.pallas_call(
        functools.partial(cbam_fused_kernel, hw_total=HW),
        out_shape=jax.ShapeDtypeStruct((B, C, HW), xf.dtype),
        grid=(B,),
        in_specs=[
            pl.BlockSpec((1, C, HW), lambda b: (b, 0, 0)),
            pl.BlockSpec((Cr, C), lambda b: (0, 0)),
            pl.BlockSpec((Cr, 1), lambda b: (0, 0)),
            pl.BlockSpec((C, Cr), lambda b: (0, 0)),
            pl.BlockSpec((C, 1), lambda b: (0, 0)),
            pl.BlockSpec((Cr, C), lambda b: (0, 0)),
            pl.BlockSpec((C, Cr), lambda b: (0, 0)),
        ],
        out_specs=pl.BlockSpec((1, C, HW), lambda b: (b, 0, 0)),
        compiler_params=pltpu.CompilerParams(
            dimension_semantics=("parallel",),
            vmem_limit_bytes=_VMEM_LIMIT_BYTES),
    )(xf, w3, b3, w4, b4, w1, w2x2)


def _cbam_two_pass(xf, w3, b3, w4, b4, w1, w2x2, Cr, budget_bytes):
    B, C, HW = xf.shape
    T, HW_pad = _pick_hw_tile(HW, C, budget_bytes)
    needs_mask = HW_pad != HW
    if needs_mask:
        xf = jnp.pad(xf, ((0, 0), (0, 0), (0, HW_pad - HW)))
    n_t = HW_pad // T

    # Pass 1: per-channel avg/max over HW + channel MLP -> chn_att (B, C, 1).
    chn_att = pl.pallas_call(
        functools.partial(cbam_stats_kernel, hw_total=HW, tile=T,
                          needs_mask=needs_mask),
        out_shape=jax.ShapeDtypeStruct((B, C, 1), jnp.float32),
        grid=(B, n_t),
        in_specs=[
            pl.BlockSpec((1, C, T), lambda b, t: (b, 0, t)),
            pl.BlockSpec((Cr, C), lambda b, t: (0, 0)),
            pl.BlockSpec((Cr, 1), lambda b, t: (0, 0)),
            pl.BlockSpec((C, Cr), lambda b, t: (0, 0)),
            pl.BlockSpec((C, 1), lambda b, t: (0, 0)),
        ],
        out_specs=pl.BlockSpec((1, C, 1), lambda b, t: (b, 0, 0)),
        scratch_shapes=[pltpu.VMEM((C, 1), jnp.float32),   # running sum
                        pltpu.VMEM((C, 1), jnp.float32)],  # running max
        compiler_params=pltpu.CompilerParams(
            dimension_semantics=("parallel", "arbitrary"),
            vmem_limit_bytes=_VMEM_LIMIT_BYTES),
    )(xf, w3, b3, w4, b4)

    # Pass 2: apply channel attention + spatial 1x1-conv MLP, tiled over HW.
    out = pl.pallas_call(
        cbam_apply_kernel,
        out_shape=jax.ShapeDtypeStruct((B, C, HW_pad), xf.dtype),
        grid=(B, n_t),
        in_specs=[
            pl.BlockSpec((1, C, T), lambda b, t: (b, 0, t)),
            pl.BlockSpec((1, C, 1), lambda b, t: (b, 0, 0)),
            pl.BlockSpec((Cr, C), lambda b, t: (0, 0)),
            pl.BlockSpec((C, Cr), lambda b, t: (0, 0)),
        ],
        out_specs=pl.BlockSpec((1, C, T), lambda b, t: (b, 0, t)),
        compiler_params=pltpu.CompilerParams(
            dimension_semantics=("parallel", "parallel"),
            vmem_limit_bytes=_VMEM_LIMIT_BYTES),
    )(xf, chn_att, w1, w2x2)

    if needs_mask:
        out = out[:, :, :HW]
    return out


def cbam_forward(x, params, *, vmem_budget_bytes=24 * 1024 * 1024):
    """CBAM forward, NCHW, PyTorch weight layouts.

    params = (w3 (Cr,C), b3 (Cr,), w4 (C,Cr), b4 (C,), w1 (Cr,C), w2 (C,Cr)),
    i.e. fc3/fc4 Linear weights+biases and the bias-free fc1/fc2 1x1-conv
    weights with the trailing 1x1 dims squeezed.
    """
    B, C, H, W = x.shape
    HW = H * W
    xf = x.reshape(B, C, HW)                       # trailing-dim merge: no HBM pass
    w3, b3, w4, b4, w1, w2 = params                # 6-tuple => no fc1/fc2 biases,
    Cr = w3.shape[0]                               # so the spa_max==spa_avg fold holds.

    w3f = w3.astype(jnp.float32)
    b3c = b3.reshape(Cr, 1).astype(jnp.float32)
    w4f = w4.astype(jnp.float32)
    b4c = b4.reshape(C, 1).astype(jnp.float32)
    w1f = w1.astype(jnp.float32)
    w2x2 = (2.0 * w2).astype(jnp.float32)          # fold sigmoid(2*spa) into fc2 weight

    slab_bytes = HW * C * 4                        # one f32 (C, HW) image slab
    if slab_bytes * 8 <= vmem_budget_bytes:        # ~8 live slabs in the fused kernel
        out = _cbam_fused(xf, w3f, b3c, w4f, b4c, w1f, w2x2, Cr)
    else:
        out = _cbam_two_pass(xf, w3f, b3c, w4f, b4c, w1f, w2x2, Cr, vmem_budget_bytes)
    return out.reshape(B, C, H, W)


# ----------------------------------- reference ----------------------------------

def cbam_reference(x, params):
    """Pure-JAX f32 reference mirroring the PyTorch forward literally (NCHW)."""
    w3, b3, w4, b4, w1, w2 = params
    chn_avg = x.mean(axis=(2, 3))                              # (B, C)
    chn_max = x.max(axis=3).max(axis=2)                        # (B, C)

    def mlp(v):
        return jnp.maximum(v @ w3.T + b3, 0.0) @ w4.T + b4

    chn_att = jax.nn.sigmoid(mlp(chn_avg) + mlp(chn_max))[:, :, None, None]
    x1 = x * chn_att

    def conv1x1(t, w):                                         # w: (Cout, Cin)
        return jnp.einsum("bchw,dc->bdhw", t, w)

    spa_avg = conv1x1(jnp.maximum(conv1x1(x1, w1), 0.0), w2)
    t = -conv1x1(-x1, w1)
    t = jnp.maximum(t, 0.0)
    spa_max = -conv1x1(-t, w2)
    spa_att = jax.nn.sigmoid(spa_avg + spa_max)
    return x1 * spa_att


if __name__ == "__main__":
    # Lane-dense test shape: C multiple of 128 so Cr = 8 and stores are unmasked.
    B, C, H, W = 2, 128, 16, 16
    reduction = 16
    Cr = C // reduction

    key = jax.random.PRNGKey(0)
    kx, k1, k2, k3, k4, k5, k6 = jax.random.split(key, 7)

    x = jax.random.normal(kx, (B, C, H, W), dtype=jnp.float32)

    # Parameters in PyTorch layout (y = W @ v + b / 1x1 conv weight (Cout, Cin)).
    w3 = jax.random.normal(k1, (Cr, C), dtype=jnp.float32) * 0.1   # fc3.weight
    b3 = jax.random.normal(k2, (Cr,), dtype=jnp.float32) * 0.1     # fc3.bias
    w4 = jax.random.normal(k3, (C, Cr), dtype=jnp.float32) * 0.1   # fc4.weight
    b4 = jax.random.normal(k4, (C,), dtype=jnp.float32) * 0.1      # fc4.bias
    w1 = jax.random.normal(k5, (Cr, C), dtype=jnp.float32) * 0.1   # fc1 1x1 conv, no bias
    w2 = jax.random.normal(k6, (C, Cr), dtype=jnp.float32) * 0.1   # fc2 1x1 conv, no bias
    params = (w3, b3, w4, b4, w1, w2)

    ref = cbam_reference(x, params)

    # Default path: fused single-pass kernel (slab fits VMEM budget).
    out_fused = jax.block_until_ready(cbam_forward(x, params))
    assert out_fused.shape == (B, C, H, W)
    err = jnp.max(jnp.abs(out_fused - ref))
    assert jnp.allclose(out_fused, ref, atol=2e-2, rtol=2e-2), (
        f"fused path mismatch vs reference, max abs err = {err}")

    # Force the tiled two-pass fallback (tiny budget -> T=128, 2 HW tiles) to
    # exercise the accumulator pattern and the apply kernel as well.
    out_tiled = jax.block_until_ready(
        cbam_forward(x, params, vmem_budget_bytes=512 * 1024))
    err = jnp.max(jnp.abs(out_tiled - ref))
    assert jnp.allclose(out_tiled, ref, atol=2e-2, rtol=2e-2), (
        f"two-pass path mismatch vs reference, max abs err = {err}")

    print("KERNEL_OK")
</pallas_src>

<mosaic_0001>
module attributes {stable_mosaic.version = 11 : i64} {
  func.func @cbam_fused_kernel(%arg0: i32, %arg1: memref<1x128x256xf32, #tpu.memory_space<vmem>>, %arg2: memref<8x128xf32, #tpu.memory_space<vmem>>, %arg3: memref<8x1xf32, #tpu.memory_space<vmem>>, %arg4: memref<128x8xf32, #tpu.memory_space<vmem>>, %arg5: memref<128x1xf32, #tpu.memory_space<vmem>>, %arg6: memref<8x128xf32, #tpu.memory_space<vmem>>, %arg7: memref<128x8xf32, #tpu.memory_space<vmem>>, %arg8: memref<1x128x256xf32, #tpu.memory_space<vmem>>) attributes {dimension_semantics = [#tpu.dimension_semantics<parallel>], iteration_bounds = array<i64: 2>, scalar_prefetch = 0 : i64, scratch_operands = 0 : i64, tpu.core_type = #tpu.core_type<tc>, window_params = [{transform_indices = @transform_0, window_bounds = array<i64: 1, 128, 256>}, {pipeline_mode = #tpu.pipeline_mode<synchronous>, transform_indices = @transform_1, window_bounds = array<i64: 8, 128>}, {pipeline_mode = #tpu.pipeline_mode<synchronous>, transform_indices = @transform_2, window_bounds = array<i64: 8, 1>}, {pipeline_mode = #tpu.pipeline_mode<synchronous>, transform_indices = @transform_3, window_bounds = array<i64: 128, 8>}, {pipeline_mode = #tpu.pipeline_mode<synchronous>, transform_indices = @transform_4, window_bounds = array<i64: 128, 1>}, {pipeline_mode = #tpu.pipeline_mode<synchronous>, transform_indices = @transform_5, window_bounds = array<i64: 8, 128>}, {pipeline_mode = #tpu.pipeline_mode<synchronous>, transform_indices = @transform_6, window_bounds = array<i64: 128, 8>}, {transform_indices = @transform_7, window_bounds = array<i64: 1, 128, 256>}]} {
    %c0 = arith.constant 0 : index
    %c0_0 = arith.constant 0 : index
    %c0_1 = arith.constant 0 : index
    %0 = vector.load %arg1[%c0, %c0_0, %c0_1] : memref<1x128x256xf32, #tpu.memory_space<vmem>>, vector<1x128x256xf32>
    %1 = vector.shape_cast %0 : vector<1x128x256xf32> to vector<128x256xf32>
    %cst = arith.constant dense<0.000000e+00> : vector<128xf32>
    %2 = vector.multi_reduction <add>, %1, %cst [1] : vector<128x256xf32> to vector<128xf32>
    %3 = vector.shape_cast %2 : vector<128xf32> to vector<128x1xf32>
    %cst_2 = arith.constant 3.906250e-03 : f32
    %4 = vector.broadcast %cst_2 : f32 to vector<128x1xf32>
    %5 = arith.mulf %3, %4 : vector<128x1xf32>
    %cst_3 = arith.constant dense<0xFF800000> : vector<128xf32>
    %6 = vector.multi_reduction <maximumf>, %1, %cst_3 [1] : vector<128x256xf32> to vector<128xf32>
    %7 = vector.shape_cast %6 : vector<128xf32> to vector<128x1xf32>
    %c0_4 = arith.constant 0 : index
    %c0_5 = arith.constant 0 : index
    %8 = vector.load %arg2[%c0_4, %c0_5] : memref<8x128xf32, #tpu.memory_space<vmem>>, vector<8x128xf32>
    %c0_6 = arith.constant 0 : index
    %c0_7 = arith.constant 0 : index
    %9 = vector.load %arg3[%c0_6, %c0_7] : memref<8x1xf32, #tpu.memory_space<vmem>>, vector<8x1xf32>
    %c0_8 = arith.constant 0 : index
    %c0_9 = arith.constant 0 : index
    %10 = vector.load %arg4[%c0_8, %c0_9] : memref<128x8xf32, #tpu.memory_space<vmem>>, vector<128x8xf32>
    %c0_10 = arith.constant 0 : index
    %c0_11 = arith.constant 0 : index
    %11 = vector.load %arg5[%c0_10, %c0_11] : memref<128x1xf32, #tpu.memory_space<vmem>>, vector<128x1xf32>
    %cst_12 = arith.constant dense<0.000000e+00> : vector<8x1xf32>
    %12 = tpu.matmul %8, %5, %cst_12 {dimension_numbers = #tpu.dot_dimension_numbers<[1], [0], [0], [1], [0, 0, 1, 1], [], []>} : vector<8x128xf32>, vector<128x1xf32>, vector<8x1xf32> -> vector<8x1xf32>
    %13 = arith.addf %12, %9 : vector<8x1xf32>
    %cst_13 = arith.constant 0.000000e+00 : f32
    %14 = vector.broadcast %cst_13 : f32 to vector<8x1xf32>
    %15 = arith.maximumf %13, %14 : vector<8x1xf32>
    %cst_14 = arith.constant dense<0.000000e+00> : vector<8x1xf32>
    %16 = tpu.matmul %8, %7, %cst_14 {dimension_numbers = #tpu.dot_dimension_numbers<[1], [0], [0], [1], [0, 0, 1, 1], [], []>} : vector<8x128xf32>, vector<128x1xf32>, vector<8x1xf32> -> vector<8x1xf32>
    %17 = arith.addf %16, %9 : vector<8x1xf32>
    %cst_15 = arith.constant 0.000000e+00 : f32
    %18 = vector.broadcast %cst_15 : f32 to vector<8x1xf32>
    %19 = arith.maximumf %17, %18 : vector<8x1xf32>
    %cst_16 = arith.constant dense<0.000000e+00> : vector<128x1xf32>
    %20 = tpu.matmul %10, %15, %cst_16 {dimension_numbers = #tpu.dot_dimension_numbers<[1], [0], [0], [1], [0, 0, 1, 1], [], []>} : vector<128x8xf32>, vector<8x1xf32>, vector<128x1xf32> -> vector<128x1xf32>
    %cst_17 = arith.constant dense<0.000000e+00> : vector<128x1xf32>
    %21 = tpu.matmul %10, %19, %cst_17 {dimension_numbers = #tpu.dot_dimension_numbers<[1], [0], [0], [1], [0, 0, 1, 1], [], []>} : vector<128x8xf32>, vector<8x1xf32>, vector<128x1xf32> -> vector<128x1xf32>
    %22 = arith.addf %20, %21 : vector<128x1xf32>
    %cst_18 = arith.constant 2.000000e+00 : f32
    %23 = vector.broadcast %cst_18 : f32 to vector<128x1xf32>
    %24 = arith.mulf %23, %11 : vector<128x1xf32>
    %25 = arith.addf %22, %24 : vector<128x1xf32>
    %26 = arith.negf %25 : vector<128x1xf32>
    %27 = math.exp %26 : vector<128x1xf32>
    %cst_19 = arith.constant 1.000000e+00 : f32
    %28 = vector.broadcast %cst_19 : f32 to vector<128x1xf32>
    %29 = arith.addf %28, %27 : vector<128x1xf32>
    %30 = arith.divf %28, %29 : vector<128x1xf32>
    %31 = vector.broadcast %30 : vector<128x1xf32> to vector<128x256xf32>
    %32 = arith.mulf %1, %31 : vector<128x256xf32>
    %c0_20 = arith.constant 0 : index
    %c0_21 = arith.constant 0 : index
    %33 = vector.load %arg6[%c0_20, %c0_21] : memref<8x128xf32, #tpu.memory_space<vmem>>, vector<8x128xf32>
    %cst_22 = arith.constant dense<0.000000e+00> : vector<8x256xf32>
    %34 = tpu.matmul %33, %32, %cst_22 {dimension_numbers = #tpu.dot_dimension_numbers<[1], [0], [0], [1], [0, 0, 1, 1], [], []>} : vector<8x128xf32>, vector<128x256xf32>, vector<8x256xf32> -> vector<8x256xf32>
    %cst_23 = arith.constant 0.000000e+00 : f32
    %35 = vector.broadcast %cst_23 : f32 to vector<8x256xf32>
    %36 = arith.maximumf %34, %35 : vector<8x256xf32>
    %c0_24 = arith.constant 0 : index
    %c0_25 = arith.constant 0 : index
    %37 = vector.load %arg7[%c0_24, %c0_25] : memref<128x8xf32, #tpu.memory_space<vmem>>, vector<128x8xf32>
    %cst_26 = arith.constant dense<0.000000e+00> : vector<128x256xf32>
    %38 = tpu.matmul %37, %36, %cst_26 {dimension_numbers = #tpu.dot_dimension_numbers<[1], [0], [0], [1], [0, 0, 1, 1], [], []>} : vector<128x8xf32>, vector<8x256xf32>, vector<128x256xf32> -> vector<128x256xf32>
    %39 = arith.negf %38 : vector<128x256xf32>
    %40 = math.exp %39 : vector<128x256xf32>
    %cst_27 = arith.constant 1.000000e+00 : f32
    %41 = vector.broadcast %cst_27 : f32 to vector<128x256xf32>
    %42 = arith.addf %41, %40 : vector<128x256xf32>
    %43 = arith.divf %41, %42 : vector<128x256xf32>
    %44 = arith.mulf %32, %43 : vector<128x256xf32>
    %c0_28 = arith.constant 0 : index
    %c0_29 = arith.constant 0 : index
    %c0_30 = arith.constant 0 : index
    %45 = vector.load %arg8[%c0_28, %c0_29, %c0_30] : memref<1x128x256xf32, #tpu.memory_space<vmem>>, vector<1x128x256xf32>
    %46 = vector.shape_cast %45 : vector<1x128x256xf32> to vector<128x256xf32>
    %47 = vector.shape_cast %44 : vector<128x256xf32> to vector<1x128x256xf32>
    tpu.vector_store %arg8[%c0_28, %c0_29, %c0_30], %47 {strides = array<i32>} : memref<1x128x256xf32, #tpu.memory_space<vmem>>, vector<1x128x256xf32>,
    return
  }
  func.func @transform_0(%arg0: i32) -> (i32, i32, i32) {
    %c0_i32 = arith.constant 0 : i32
    %c0_i32_0 = arith.constant 0 : i32
    %c0_i32_1 = arith.constant 0 : i32
    return %arg0, %c0_i32, %c0_i32_0 : i32, i32, i32
  }
  func.func @transform_1(%arg0: i32) -> (i32, i32) {
    %c0_i32 = arith.constant 0 : i32
    %c0_i32_0 = arith.constant 0 : i32
    %c0_i32_1 = arith.constant 0 : i32
    return %c0_i32, %c0_i32_0 : i32, i32
  }
  func.func @transform_2(%arg0: i32) -> (i32, i32) {
    %c0_i32 = arith.constant 0 : i32
    %c0_i32_0 = arith.constant 0 : i32
    %c0_i32_1 = arith.constant 0 : i32
    return %c0_i32, %c0_i32_0 : i32, i32
  }
  func.func @transform_3(%arg0: i32) -> (i32, i32) {
    %c0_i32 = arith.constant 0 : i32
    %c0_i32_0 = arith.constant 0 : i32
    %c0_i32_1 = arith.constant 0 : i32
    return %c0_i32, %c0_i32_0 : i32, i32
  }
  func.func @transform_4(%arg0: i32) -> (i32, i32) {
    %c0_i32 = arith.constant 0 : i32
    %c0_i32_0 = arith.constant 0 : i32
    %c0_i32_1 = arith.constant 0 : i32
    return %c0_i32, %c0_i32_0 : i32, i32
  }
  func.func @transform_5(%arg0: i32) -> (i32, i32) {
    %c0_i32 = arith.constant 0 : i32
    %c0_i32_0 = arith.constant 0 : i32
    %c0_i32_1 = arith.constant 0 : i32
    return %c0_i32, %c0_i32_0 : i32, i32
  }
  func.func @transform_6(%arg0: i32) -> (i32, i32) {
    %c0_i32 = arith.constant 0 : i32
    %c0_i32_0 = arith.constant 0 : i32
    %c0_i32_1 = arith.constant 0 : i32
    return %c0_i32, %c0_i32_0 : i32, i32
  }
  func.func @transform_7(%arg0: i32) -> (i32, i32, i32) {
    %c0_i32 = arith.constant 0 : i32
    %c0_i32_0 = arith.constant 0 : i32
    %c0_i32_1 = arith.constant 0 : i32
    return %arg0, %c0_i32, %c0_i32_0 : i32, i32, i32
  }
}

</mosaic_0001>

<llo_original>
// kernel: tpu_custom_call.1
$region0: #{tpu_custom_call.1}
  #allocation0 [shape = 'u32[]', space=smem, size = 0x4, offset = 0x4, fixed_abs, tag = 'smem constant byte address 0x4 - core index']
  #allocation1 [shape = 'u32[144,128]{1,0:T(1,128)}', space=vmem, size = 0x12000, scoped, tag = 'internal scratch']
  %s0 = inlined_call_operand.hbm [shape: f32[2,128,256], index: 0, kind: input, shape index: {}]
  %s1 = inlined_call_operand.vmem [shape: f32[8,128], index: 1, kind: input, shape index: {}]
  %s2 = inlined_call_operand.vmem [shape: f32[8,1], index: 2, kind: input, shape index: {}]
  %s3 = inlined_call_operand.vmem [shape: f32[128,8], index: 3, kind: input, shape index: {}]
  %s4 = inlined_call_operand.vmem [shape: f32[128,1], index: 4, kind: input, shape index: {}]
  %s5 = inlined_call_operand.vmem [shape: f32[8,128], index: 5, kind: input, shape index: {}]
  %s6 = inlined_call_operand.vmem [shape: f32[128,8], index: 6, kind: input, shape index: {}]
  %s7 = inlined_call_operand.hbm [shape: f32[2,128,256], index: 7, kind: output, shape index: {}]
  %s8 = sld [smem:[#allocation0]]
  $region65: #{tpu_custom_call.1} parent=0
    _
  %s10 = ssub.s32 1, %s8
  %s11 = scalar_select 0, %s10, %s8
  $region1: #{tpu_custom_call.1} parent=0
    #allocation2 [shape = 'u8[262144]{0}', space=vmem, size = 0x40000, scoped, tag = 'input window, operand 0']
    #allocation3 [shape = 's32[2]{0}', space=sflag, size = 0x8, scoped, tag = 'scoped memory for tpu_custom_call.1']
    #allocation4 [shape = 's32[2]{0}', space=sflag, size = 0x8, scoped, tag = 'scoped memory for tpu_custom_call.1']
    #allocation5 [shape = 'u8[262144]{0}', space=vmem, size = 0x40000, scoped, tag = 'output window, operand 0']
    %12 = vsyncpa [#allocation3], 0
    %s13 = scalar_lea.sflag [#allocation3], 1
    %14 = vsyncpa %s13, 0
    %15 = vsyncpa [#allocation4], 0
    %s16 = scalar_lea.sflag [#allocation4], 1
    %17 = vsyncpa %s16, 0
    loop: start=0, step=1, limit=4
    $region2: #{tpu_custom_call.1} parent=1 // loop_pre_header
      _
    $region3: #{tpu_custom_call.1} parent=1 // loop_header
      %s19 = sphi 0, %s23
      %p20 = scmp.ge.s32.totalorder %s19, 4
      %s29 = sphi 0, %s31
      %s32 = sphi 0, %s29
      %s33 = sphi 0, %s32
      %s49 = sphi 0, %s33
      %s53 = sphi 0, %s53
      %s55 = sphi 0, %s53
      %s56 = sphi 0, %s55
      %s70 = sphi 0, %s56
      %s74 = sphi 0, %s74
      %s76 = sphi 0, %s74
      %s77 = sphi 0, %s76
      %s91 = sphi 0, %s77
      %s95 = sphi 0, %s95
      %s97 = sphi 0, %s95
      %s98 = sphi 0, %s97
      %s112 = sphi 0, %s98
      %s116 = sphi 0, %s116
      %s118 = sphi 0, %s116
      %s119 = sphi 0, %s118
      %s133 = sphi 0, %s119
      %s137 = sphi 0, %s137
      %s139 = sphi 0, %s137
      %s140 = sphi 0, %s139
      %s154 = sphi 0, %s140
      %s158 = sphi 0, %s158
      %s160 = sphi 0, %s158
      %s161 = sphi 0, %s160
      %s175 = sphi 0, %s161
      %s181 = sphi 0, %s183
      %s184 = sphi 0, %s181
      %s185 = sphi 0, %s184
      %s201 = sphi 0, %s185
    $region4: #{tpu_custom_call.1} parent=1 // loop_header_branch
      %22 = sbr.rel (%p20) target = $region8
    $region5: #{tpu_custom_call.1} parent=1 // loop_body
      %s24 = ssub.s32 %s19, 1
      %s25 = ssub.s32 %s19, 2
      %s26 = sadd.s32 %s19, 1
      %s27 = ssub.s32 %s19, %s26
      %p28 = scmp.eq.s32.totalorder %s27, 0
      %s30 = sadd.s32 %s29, 1
      %s31 = scalar_select %p28, %s29, %s30
      %p34 = pneg %p28
      %p35 = scmp.eq.s32.totalorder %s19, 1
      %p36 = por %p34, %p35
      %p37 = scmp.ne.s32.totalorder %s29, %s32
      %p38 = scmp.eq.s32.totalorder %s19, 0
      %p39 = por %p37, %p38
      %p40 = scmp.ne.s32.totalorder %s29, %s32
      %p41 = scmp.eq.s32.totalorder %s24, 1
      %p42 = por %p40, %p41
      %p43 = scmp.ne.s32.totalorder %s32, %s33
      %p44 = scmp.eq.s32.totalorder %s24, 0
      %p45 = por %p43, %p44
      %p46 = scmp.ne.s32.totalorder %s32, %s33
      %p47 = scmp.eq.s32.totalorder %s25, 1
      %p48 = por %p46, %p47
      %p50 = scmp.ne.s32.totalorder %s33, %s49
      %p51 = scmp.eq.s32.totalorder %s25, 0
      %p52 = por %p50, %p51
      %s54 = sadd.s32 %s53, 1
      %p57 = scmp.eq.s32.totalorder %s19, 1
      %p58 = scmp.ne.s32.totalorder %s53, %s55
      %p59 = scmp.eq.s32.totalorder %s19, 0
      %p60 = por %p58, %p59
      %p61 = scmp.ne.s32.totalorder %s53, %s55
      %p62 = scmp.eq.s32.totalorder %s24, 1
      %p63 = por %p61, %p62
      %p64 = scmp.ne.s32.totalorder %s55, %s56
      %p65 = scmp.eq.s32.totalorder %s24, 0
      %p66 = por %p64, %p65
      %p67 = scmp.ne.s32.totalorder %s55, %s56
      %p68 = scmp.eq.s32.totalorder %s25, 1
      %p69 = por %p67, %p68
      %p71 = scmp.ne.s32.totalorder %s56, %s70
      %p72 = scmp.eq.s32.totalorder %s25, 0
      %p73 = por %p71, %p72
      %s75 = sadd.s32 %s74, 1
      %p78 = scmp.eq.s32.totalorder %s19, 1
      %p79 = scmp.ne.s32.totalorder %s74, %s76
      %p80 = scmp.eq.s32.totalorder %s19, 0
      %p81 = por %p79, %p80
      %p82 = scmp.ne.s32.totalorder %s74, %s76
      %p83 = scmp.eq.s32.totalorder %s24, 1
      %p84 = por %p82, %p83
      %p85 = scmp.ne.s32.totalorder %s76, %s77
      %p86 = scmp.eq.s32.totalorder %s24, 0
      %p87 = por %p85, %p86
      %p88 = scmp.ne.s32.totalorder %s76, %s77
      %p89 = scmp.eq.s32.totalorder %s25, 1
      %p90 = por %p88, %p89
      %p92 = scmp.ne.s32.totalorder %s77, %s91
      %p93 = scmp.eq.s32.totalorder %s25, 0
      %p94 = por %p92, %p93
      %s96 = sadd.s32 %s95, 1
      %p99 = scmp.eq.s32.totalorder %s19, 1
      %p100 = scmp.ne.s32.totalorder %s95, %s97
      %p101 = scmp.eq.s32.totalorder %s19, 0
      %p102 = por %p100, %p101
      %p103 = scmp.ne.s32.totalorder %s95, %s97
      %p104 = scmp.eq.s32.totalorder %s24, 1
      %p105 = por %p103, %p104
      %p106 = scmp.ne.s32.totalorder %s97, %s98
      %p107 = scmp.eq.s32.totalorder %s24, 0
      %p108 = por %p106, %p107
      %p109 = scmp.ne.s32.totalorder %s97, %s98
      %p110 = scmp.eq.s32.totalorder %s25, 1
      %p111 = por %p109, %p110
      %p113 = scmp.ne.s32.totalorder %s98, %s112
      %p114 = scmp.eq.s32.totalorder %s25, 0
      %p115 = por %p113, %p114
      %s117 = sadd.s32 %s116, 1
      %p120 = scmp.eq.s32.totalorder %s19, 1
      %p121 = scmp.ne.s32.totalorder %s116, %s118
      %p122 = scmp.eq.s32.totalorder %s19, 0
      %p123 = por %p121, %p122
      %p124 = scmp.ne.s32.totalorder %s116, %s118
      %p125 = scmp.eq.s32.totalorder %s24, 1
      %p126 = por %p124, %p125
      %p127 = scmp.ne.s32.totalorder %s118, %s119
      %p128 = scmp.eq.s32.totalorder %s24, 0
      %p129 = por %p127, %p128
      %p130 = scmp.ne.s32.totalorder %s118, %s119
      %p131 = scmp.eq.s32.totalorder %s25, 1
      %p132 = por %p130, %p131
      %p134 = scmp.ne.s32.totalorder %s119, %s133
      %p135 = scmp.eq.s32.totalorder %s25, 0
      %p136 = por %p134, %p135
      %s138 = sadd.s32 %s137, 1
      %p141 = scmp.eq.s32.totalorder %s19, 1
      %p142 = scmp.ne.s32.totalorder %s137, %s139
      %p143 = scmp.eq.s32.totalorder %s19, 0
      %p144 = por %p142, %p143
      %p145 = scmp.ne.s32.totalorder %s137, %s139
      %p146 = scmp.eq.s32.totalorder %s24, 1
      %p147 = por %p145, %p146
      %p148 = scmp.ne.s32.totalorder %s139, %s140
      %p149 = scmp.eq.s32.totalorder %s24, 0
      %p150 = por %p148, %p149
      %p151 = scmp.ne.s32.totalorder %s139, %s140
      %p152 = scmp.eq.s32.totalorder %s25, 1
      %p153 = por %p151, %p152
      %p155 = scmp.ne.s32.totalorder %s140, %s154
      %p156 = scmp.eq.s32.totalorder %s25, 0
      %p157 = por %p155, %p156
      %s159 = sadd.s32 %s158, 1
      %p162 = scmp.eq.s32.totalorder %s19, 1
      %p163 = scmp.ne.s32.totalorder %s158, %s160
      %p164 = scmp.eq.s32.totalorder %s19, 0
      %p165 = por %p163, %p164
      %p166 = scmp.ne.s32.totalorder %s158, %s160
      %p167 = scmp.eq.s32.totalorder %s24, 1
      %p168 = por %p166, %p167
      %p169 = scmp.ne.s32.totalorder %s160, %s161
      %p170 = scmp.eq.s32.totalorder %s24, 0
      %p171 = por %p169, %p170
      %p172 = scmp.ne.s32.totalorder %s160, %s161
      %p173 = scmp.eq.s32.totalorder %s25, 1
      %p174 = por %p172, %p173
      %p176 = scmp.ne.s32.totalorder %s161, %s175
      %p177 = scmp.eq.s32.totalorder %s25, 0
      %p178 = por %p176, %p177
      %s179 = ssub.s32 %s19, %s26
      %p180 = scmp.eq.s32.totalorder %s179, 0
      %s182 = sadd.s32 %s181, 1
      %s183 = scalar_select %p180, %s181, %s182
      %p186 = pneg %p180
      %p187 = scmp.eq.s32.totalorder %s19, 1
      %p188 = por %p186, %p187
      %p189 = scmp.ne.s32.totalorder %s181, %s184
      %p190 = scmp.eq.s32.totalorder %s19, 0
      %p191 = por %p189, %p190
      %p192 = scmp.ne.s32.totalorder %s181, %s184
      %p193 = scmp.eq.s32.totalorder %s24, 1
      %p194 = por %p192, %p193
      %p195 = scmp.ne.s32.totalorder %s184, %s185
      %p196 = scmp.eq.s32.totalorder %s24, 0
      %p197 = por %p195, %p196
      %p198 = scmp.ne.s32.totalorder %s184, %s185
      %p199 = scmp.eq.s32.totalorder %s25, 1
      %p200 = por %p198, %p199
      %p202 = scmp.ne.s32.totalorder %s185, %s201
      %p203 = scmp.eq.s32.totalorder %s25, 0
      %p204 = por %p202, %p203
      %p205 = scmp.le.s32.totalorder 1, %s19
      %p206 = scmp.lt.s32.totalorder %s19, 3
      %p207 = pnand %p205, %p206
      %p208 = pneg %p207
      // Predicated region
      $region9: #{tpu_custom_call.1} parent=5 // pred_check
        _
      $region10: #{tpu_custom_call.1} parent=5 // pred_check_branch
        %210 = sbr.rel (%p207) target = $region12
      $region11: #{tpu_custom_call.1} parent=5 // pred_region
        %s211 = ssub.s32 %s19, 1
        // Predicated region
        $region13: #{tpu_custom_call.1} parent=11 // pred_check
          %p212 = pneg %p66
        $region14: #{tpu_custom_call.1} parent=11 // pred_check_branch
          %214 = sbr.rel (%p212) target = $region16
        $region15: #{tpu_custom_call.1} parent=11 // pred_region
          _
        $region16: #{tpu_custom_call.1} parent=11 // pred_fallthru
          _
        // Predicated region
        $region17: #{tpu_custom_call.1} parent=11 // pred_check
          %p215 = pneg %p87
        $region18: #{tpu_custom_call.1} parent=11 // pred_check_branch
          %217 = sbr.rel (%p215) target = $region20
        $region19: #{tpu_custom_call.1} parent=11 // pred_region
          _
        $region20: #{tpu_custom_call.1} parent=11 // pred_fallthru
          _
        // Predicated region
        $region21: #{tpu_custom_call.1} parent=11 // pred_check
          %p218 = pneg %p108
        $region22: #{tpu_custom_call.1} parent=11 // pred_check_branch
          %220 = sbr.rel (%p218) target = $region24
        $region23: #{tpu_custom_call.1} parent=11 // pred_region
          _
        $region24: #{tpu_custom_call.1} parent=11 // pred_fallthru
          _
        // Predicated region
        $region25: #{tpu_custom_call.1} parent=11 // pred_check
          %p221 = pneg %p129
        $region26: #{tpu_custom_call.1} parent=11 // pred_check_branch
          %223 = sbr.rel (%p221) target = $region28
        $region27: #{tpu_custom_call.1} parent=11 // pred_region
          _
        $region28: #{tpu_custom_call.1} parent=11 // pred_fallthru
          _
        // Predicated region
        $region29: #{tpu_custom_call.1} parent=11 // pred_check
          %p224 = pneg %p150
        $region30: #{tpu_custom_call.1} parent=11 // pred_check_branch
          %226 = sbr.rel (%p224) target = $region32
        $region31: #{tpu_custom_call.1} parent=11 // pred_region
          _
        $region32: #{tpu_custom_call.1} parent=11 // pred_fallthru
          _
        // Predicated region
        $region33: #{tpu_custom_call.1} parent=11 // pred_check
          %p227 = pneg %p171
        $region34: #{tpu_custom_call.1} parent=11 // pred_check_branch
          %229 = sbr.rel (%p227) target = $region36
        $region35: #{tpu_custom_call.1} parent=11 // pred_region
          _
        $region36: #{tpu_custom_call.1} parent=11 // pred_fallthru
          _
      $region12: #{tpu_custom_call.1} parent=5 // pred_fallthru
        _
      %p230 = scmp.lt.s32.totalorder %s19, 2
      // Predicated region
      $region37: #{tpu_custom_call.1} parent=5 // pred_check
        %p231 = pneg %p230
      $region38: #{tpu_custom_call.1} parent=5 // pred_check_branch
        %233 = sbr.rel (%p231) target = $region40
      $region39: #{tpu_custom_call.1} parent=5 // pred_region
        // Predicated region
        $region41: #{tpu_custom_call.1} parent=39 // pred_check
          %p234 = pneg %p39
        $region42: #{tpu_custom_call.1} parent=39 // pred_check_branch
          %236 = sbr.rel (%p234) target = $region44
        $region43: #{tpu_custom_call.1} parent=39 // pred_region
          %s237 = sand.u32 %s29, 1
          %s238 = scalar_lea.sflag [#allocation3], %s237
          %s239 = sand.u32 %s29, 1
          %s240 = smul.addr %s239, 256
          %s241 = scalar_lea.vmem [#allocation2], %s240
          %s243 = ssub.s32 4096, 4096
          %244 = vsyncadd %s238, %s243
          %s245 = smul.addr %s19, 32
          %s246 = smul.addr %s245, 128
          %s247 = scalar_lea.hbm %s0, %s246
          %s248 = sshll.u32 %s241, 4
          %s249 = int_to_ptr.vmem [resolvable:$true] %s248
          %254 = dma.hbm_to_vmem [thread:$0]  %s247, 4096, %s249, %s238, 256, 256, 16
        $region44: #{tpu_custom_call.1} parent=39 // pred_fallthru
          _
      $region40: #{tpu_custom_call.1} parent=5 // pred_fallthru
        _
      %p255 = scmp.le.s32.totalorder 1, %s19
      %p256 = scmp.lt.s32.totalorder %s19, 3
      %p257 = pnand %p255, %p256
      %p258 = pneg %p257
      // Predicated region
      $region45: #{tpu_custom_call.1} parent=5 // pred_check
        _
      $region46: #{tpu_custom_call.1} parent=5 // pred_check_branch
        %260 = sbr.rel (%p257) target = $region48
      $region47: #{tpu_custom_call.1} parent=5 // pred_region
        %s261 = ssub.s32 %s19, 1
        %s262 = sand.u32 %s32, 1
        %s263 = scalar_lea.sflag [#allocation3], %s262
        %s264 = sand.u32 %s32, 1
        %s265 = smul.addr %s264, 256
        %s266 = scalar_lea.vmem [#allocation2], %s265
        // Predicated region
        $region49: #{tpu_custom_call.1} parent=47 // pred_check
          %p267 = pneg %p45
        $region50: #{tpu_custom_call.1} parent=47 // pred_check_branch
          %269 = sbr.rel (%p267) target = $region52
        $region51: #{tpu_custom_call.1} parent=47 // pred_region
          %270 = dma.done %s263, 4096
        $region52: #{tpu_custom_call.1} parent=47 // pred_fallthru
          _
        %s271 = sand.u32 %s32, 1
        %s272 = scalar_lea.sflag [#allocation3], %s271
        %s273 = sand.u32 %s32, 1
        %s274 = smul.addr %s273, 256
        %s275 = scalar_lea.vmem [#allocation2], %s274
        %p276 = pneg %p45
        %p277 = pneg %p42
        %p278 = pneg %p66
        %p279 = pneg %p63
        %p280 = pneg %p87
        %p281 = pneg %p84
        %p282 = pneg %p108
        %p283 = pneg %p105
        %p284 = pneg %p129
        %p285 = pneg %p126
        %p286 = pneg %p150
        %p287 = pneg %p147
        %p288 = pneg %p171
        %p289 = pneg %p168
        %p290 = pneg %p197
        %p291 = pneg %p194
        %s292 = sand.u32 %s184, 1
        %s293 = scalar_lea.sflag [#allocation4], %s292
        %s294 = sand.u32 %s184, 1
        %s295 = smul.addr %s294, 256
        %s296 = scalar_lea.vmem [#allocation5], %s295
        %v297 = vld [vmem:[%s266] sm:$0xff]
        %v298 = vld [vmem:[%s266 + $0x8] sm:$0xff]
        %v299 = vld [vmem:[%s266 + $0x10] sm:$0xff]
        %v300 = vld [vmem:[%s266 + $0x18] sm:$0xff]
        %v301 = vld [vmem:[%s266 + $0x20] sm:$0xff]
        %v302 = vld [vmem:[%s266 + $0x28] sm:$0xff]
        %v303 = vld [vmem:[%s266 + $0x30] sm:$0xff]
        %v304 = vld [vmem:[%s266 + $0x38] sm:$0xff]
        %v305 = vld [vmem:[%s266 + $0x40] sm:$0xff]
        %v306 = vld [vmem:[%s266 + $0x48] sm:$0xff]
        %v307 = vld [vmem:[%s266 + $0x50] sm:$0xff]
        %v308 = vld [vmem:[%s266 + $0x58] sm:$0xff]
        %v309 = vld [vmem:[%s266 + $0x60] sm:$0xff]
        %v310 = vld [vmem:[%s266 + $0x68] sm:$0xff]
        %v311 = vld [vmem:[%s266 + $0x70] sm:$0xff]
        %v312 = vld [vmem:[%s266 + $0x78] sm:$0xff]
        %v313 = vld [vmem:[%s266 + $0x80] sm:$0xff]
        %v314 = vld [vmem:[%s266 + $0x88] sm:$0xff]
        %v315 = vld [vmem:[%s266 + $0x90] sm:$0xff]
        %v316 = vld [vmem:[%s266 + $0x98] sm:$0xff]
        %v317 = vld [vmem:[%s266 + $0xa0] sm:$0xff]
        %v318 = vld [vmem:[%s266 + $0xa8] sm:$0xff]
        %v319 = vld [vmem:[%s266 + $0xb0] sm:$0xff]
        %v320 = vld [vmem:[%s266 + $0xb8] sm:$0xff]
        %v321 = vld [vmem:[%s266 + $0xc0] sm:$0xff]
        %v322 = vld [vmem:[%s266 + $0xc8] sm:$0xff]
        %v323 = vld [vmem:[%s266 + $0xd0] sm:$0xff]
        %v324 = vld [vmem:[%s266 + $0xd8] sm:$0xff]
        %v325 = vld [vmem:[%s266 + $0xe0] sm:$0xff]
        %v326 = vld [vmem:[%s266 + $0xe8] sm:$0xff]
        %v327 = vld [vmem:[%s266 + $0xf0] sm:$0xff]
        %v328 = vld [vmem:[%s266 + $0xf8] sm:$0xff]
        %v329 = vadd.f32 %v297, %v298
        %330 = vadd.xlane.f32.xlu0 %v329
        %v331 = vpop.xlane.xlu0 %330
        %v332 = vadd.f32 %v299, %v300
        %333 = vadd.xlane.f32.xlu0 %v332
        %v334 = vpop.xlane.xlu0 %333
        %v335 = vadd.f32 %v301, %v302
        %336 = vadd.xlane.f32.xlu0 %v335
        %v337 = vpop.xlane.xlu0 %336
        %v338 = vadd.f32 %v303, %v304
        %339 = vadd.xlane.f32.xlu0 %v338
        %v340 = vpop.xlane.xlu0 %339
        %v341 = vadd.f32 %v305, %v306
        %342 = vadd.xlane.f32.xlu0 %v341
        %v343 = vpop.xlane.xlu0 %342
        %v344 = vadd.f32 %v307, %v308
        %345 = vadd.xlane.f32.xlu0 %v344
        %v346 = vpop.xlane.xlu0 %345
        %v347 = vadd.f32 %v309, %v310
        %348 = vadd.xlane.f32.xlu0 %v347
        %v349 = vpop.xlane.xlu0 %348
        %v350 = vadd.f32 %v311, %v312
        %351 = vadd.xlane.f32.xlu0 %v350
        %v352 = vpop.xlane.xlu0 %351
        %v353 = vadd.f32 %v313, %v314
        %354 = vadd.xlane.f32.xlu0 %v353
        %v355 = vpop.xlane.xlu0 %354
        %v356 = vadd.f32 %v315, %v316
        %357 = vadd.xlane.f32.xlu0 %v356
        %v358 = vpop.xlane.xlu0 %357
        %v359 = vadd.f32 %v317, %v318
        %360 = vadd.xlane.f32.xlu0 %v359
        %v361 = vpop.xlane.xlu0 %360
        %v362 = vadd.f32 %v319, %v320
        %363 = vadd.xlane.f32.xlu0 %v362
        %v364 = vpop.xlane.xlu0 %363
        %v365 = vadd.f32 %v321, %v322
        %366 = vadd.xlane.f32.xlu0 %v365
        %v367 = vpop.xlane.xlu0 %366
        %v368 = vadd.f32 %v323, %v324
        %369 = vadd.xlane.f32.xlu0 %v368
        %v370 = vpop.xlane.xlu0 %369
        %v371 = vadd.f32 %v325, %v326
        %372 = vadd.xlane.f32.xlu0 %v371
        %v373 = vpop.xlane.xlu0 %372
        %v374 = vadd.f32 %v327, %v328
        %375 = vadd.xlane.f32.xlu0 %v374
        %v376 = vpop.xlane.xlu0 %375
        %v377 = vmul.f32 %v331, 0.00390625
        %v378 = vmul.f32 %v334, 0.00390625
        %v379 = vmul.f32 %v337, 0.00390625
        %v380 = vmul.f32 %v340, 0.00390625
        %v381 = vmul.f32 %v343, 0.00390625
        %v382 = vmul.f32 %v346, 0.00390625
        %v383 = vmul.f32 %v349, 0.00390625
        %v384 = vmul.f32 %v352, 0.00390625
        %v385 = vmul.f32 %v355, 0.00390625
        %v386 = vmul.f32 %v358, 0.00390625
        %v387 = vmul.f32 %v361, 0.00390625
        %v388 = vmul.f32 %v364, 0.00390625
        %v389 = vmul.f32 %v367, 0.00390625
        %v390 = vmul.f32 %v370, 0.00390625
        %v391 = vmul.f32 %v373, 0.00390625
        %v392 = vmul.f32 %v376, 0.00390625
        %v393 = vmax.f32 %v297, %v298
        %394 = vmax.xlane.f32.xlu0 %v393
        %v395 = vpop.xlane.xlu0 %394
        %v396 = vmax.f32 %v299, %v300
        %397 = vmax.xlane.f32.xlu0 %v396
        %v398 = vpop.xlane.xlu0 %397
        %v399 = vmax.f32 %v301, %v302
        %400 = vmax.xlane.f32.xlu0 %v399
        %v401 = vpop.xlane.xlu0 %400
        %v402 = vmax.f32 %v303, %v304
        %403 = vmax.xlane.f32.xlu0 %v402
        %v404 = vpop.xlane.xlu0 %403
        %v405 = vmax.f32 %v305, %v306
        %406 = vmax.xlane.f32.xlu0 %v405
        %v407 = vpop.xlane.xlu0 %406
        %v408 = vmax.f32 %v307, %v308
        %409 = vmax.xlane.f32.xlu0 %v408
        %v410 = vpop.xlane.xlu0 %409
        %v411 = vmax.f32 %v309, %v310
        %412 = vmax.xlane.f32.xlu0 %v411
        %v413 = vpop.xlane.xlu0 %412
        %v414 = vmax.f32 %v311, %v312
        %415 = vmax.xlane.f32.xlu0 %v414
        %v416 = vpop.xlane.xlu0 %415
        %v417 = vmax.f32 %v313, %v314
        %418 = vmax.xlane.f32.xlu0 %v417
        %v419 = vpop.xlane.xlu0 %418
        %v420 = vmax.f32 %v315, %v316
        %421 = vmax.xlane.f32.xlu0 %v420
        %v422 = vpop.xlane.xlu0 %421
        %v423 = vmax.f32 %v317, %v318
        %424 = vmax.xlane.f32.xlu0 %v423
        %v425 = vpop.xlane.xlu0 %424
        %v426 = vmax.f32 %v319, %v320
        %427 = vmax.xlane.f32.xlu0 %v426
        %v428 = vpop.xlane.xlu0 %427
        %v429 = vmax.f32 %v321, %v322
        %430 = vmax.xlane.f32.xlu0 %v429
        %v431 = vpop.xlane.xlu0 %430
        %v432 = vmax.f32 %v323, %v324
        %433 = vmax.xlane.f32.xlu0 %v432
        %v434 = vpop.xlane.xlu0 %433
        %v435 = vmax.f32 %v325, %v326
        %436 = vmax.xlane.f32.xlu0 %v435
        %v437 = vpop.xlane.xlu0 %436
        %v438 = vmax.f32 %v327, %v328
        %439 = vmax.xlane.f32.xlu0 %v438
        %v440 = vpop.xlane.xlu0 %439
        %v441 = vld [vmem:[%s1] sm:$0xff]
        %v442 = vld [vmem:[%s2] sm:$0xff]
        %v443 = vld [vmem:[%s3] sm:$0xff]
        %v444 = vld [vmem:[%s3 + $0x8] sm:$0xff]
        %v445 = vld [vmem:[%s3 + $0x10] sm:$0xff]
        %v446 = vld [vmem:[%s3 + $0x18] sm:$0xff]
        %v447 = vld [vmem:[%s3 + $0x20] sm:$0xff]
        %v448 = vld [vmem:[%s3 + $0x28] sm:$0xff]
        %v449 = vld [vmem:[%s3 + $0x30] sm:$0xff]
        %v450 = vld [vmem:[%s3 + $0x38] sm:$0xff]
        %v451 = vld [vmem:[%s3 + $0x40] sm:$0xff]
        %v452 = vld [vmem:[%s3 + $0x48] sm:$0xff]
        %v453 = vld [vmem:[%s3 + $0x50] sm:$0xff]
        %v454 = vld [vmem:[%s3 + $0x58] sm:$0xff]
        %v455 = vld [vmem:[%s3 + $0x60] sm:$0xff]
        %v456 = vld [vmem:[%s3 + $0x68] sm:$0xff]
        %v457 = vld [vmem:[%s3 + $0x70] sm:$0xff]
        %v458 = vld [vmem:[%s3 + $0x78] sm:$0xff]
        %v459 = vld [vmem:[%s4] sm:$0xff]
        %v460 = vld [vmem:[%s4 + $0x8] sm:$0xff]
        %v461 = vld [vmem:[%s4 + $0x10] sm:$0xff]
        %v462 = vld [vmem:[%s4 + $0x18] sm:$0xff]
        %v463 = vld [vmem:[%s4 + $0x20] sm:$0xff]
        %v464 = vld [vmem:[%s4 + $0x28] sm:$0xff]
        %v465 = vld [vmem:[%s4 + $0x30] sm:$0xff]
        %v466 = vld [vmem:[%s4 + $0x38] sm:$0xff]
        %v467 = vld [vmem:[%s4 + $0x40] sm:$0xff]
        %v468 = vld [vmem:[%s4 + $0x48] sm:$0xff]
        %v469 = vld [vmem:[%s4 + $0x50] sm:$0xff]
        %v470 = vld [vmem:[%s4 + $0x58] sm:$0xff]
        %v471 = vld [vmem:[%s4 + $0x60] sm:$0xff]
        %v472 = vld [vmem:[%s4 + $0x68] sm:$0xff]
        %v473 = vld [vmem:[%s4 + $0x70] sm:$0xff]
        %v474 = vld [vmem:[%s4 + $0x78] sm:$0xff]
        %475 = vmatprep.subr.mxu0 0.0
        %476 = vmatpush1.msra.mxu0 %v377
        %477 = vmatprep.subr.mxu0 0.0
        %478 = vmatpush1.msra.mxu0 %v378
        %479 = vmatprep.subr.mxu0 0.0
        %480 = vmatpush1.msra.mxu0 %v379
        %481 = vmatprep.subr.mxu0 0.0
        %482 = vmatpush1.msra.mxu0 %v380
        %483 = vmatprep.subr.mxu0 0.0
        %484 = vmatpush1.msra.mxu0 %v381
        %485 = vmatprep.subr.mxu0 0.0
        %486 = vmatpush1.msra.mxu0 %v382
        %487 = vmatprep.subr.mxu0 0.0
        %488 = vmatpush1.msra.mxu0 %v383
        %489 = vmatprep.subr.mxu0 0.0
        %490 = vmatpush1.msra.mxu0 %v384
        %491 = vmatprep.subr.mxu0 0.0
        %492 = vmatpush1.msra.mxu0 %v385
        %493 = vmatprep.subr.mxu0 0.0
        %494 = vmatpush1.msra.mxu0 %v386
        %495 = vmatprep.subr.mxu0 0.0
        %496 = vmatpush1.msra.mxu0 %v387
        %497 = vmatprep.subr.mxu0 0.0
        %498 = vmatpush1.msra.mxu0 %v388
        %499 = vmatprep.subr.mxu0 0.0
        %500 = vmatpush1.msra.mxu0 %v389
        %501 = vmatprep.subr.mxu0 0.0
        %502 = vmatpush1.msra.mxu0 %v390
        %503 = vmatprep.subr.mxu0 0.0
        %504 = vmatpush1.msra.mxu0 %v391
        %505 = vmatprep.subr.mxu0 0.0
        %506 = vmatpush1.msra.mxu0 %v392
        %507 = vmatprep.subr.mxu0 0.0
        %508 = vmatpush1.msra.mxu0 0.0
        %509 = vmatprep.subr.mxu0 0.0
        %510 = vmatpush1.msra.mxu0 0.0
        %511 = vmatprep.subr.mxu0 0.0
        %512 = vmatpush1.msra.mxu0 0.0
        %513 = vmatprep.subr.mxu0 0.0
        %514 = vmatpush1.msra.mxu0 0.0
        %515 = vmatprep.subr.mxu0 0.0
        %516 = vmatpush1.msra.mxu0 0.0
        %517 = vmatprep.subr.mxu0 0.0
        %518 = vmatpush1.msra.mxu0 0.0
        %519 = vmatprep.subr.mxu0 0.0
        %520 = vmatpush1.msra.mxu0 0.0
        %521 = vmatprep.subr.mxu0 0.0
        %522 = vmatpush1.msra.mxu0 0.0
        %523 = vmatprep.subr.mxu0 0.0
        %524 = vmatpush1.msra.mxu0 0.0
        %525 = vmatprep.subr.mxu0 0.0
        %526 = vmatpush1.msra.mxu0 0.0
        %527 = vmatprep.subr.mxu0 0.0
        %528 = vmatpush1.msra.mxu0 0.0
        %529 = vmatprep.subr.mxu0 0.0
        %530 = vmatpush1.msra.mxu0 0.0
        %531 = vmatprep.subr.mxu0 0.0
        %532 = vmatpush1.msra.mxu0 0.0
        %533 = vmatprep.subr.mxu0 0.0
        %534 = vmatpush1.msra.mxu0 0.0
        %535 = vmatprep.subr.mxu0 0.0
        %536 = vmatpush1.msra.mxu0 0.0
        %537 = vmatprep.subr.mxu0 0.0
        %538 = vmatpush1.msra.mxu0 0.0
        %539 = vmatprep.mubr.f32.mxu0 0.0
        %540 = vmatmul.mubr.f32.gmra.mrb[0].mxu0 %v441
        %v541 = vpop.f32.mrb[0].mxu0
        %v542 = vadd.f32 %v442, %v541
        %v543 = vpop.f32.mrb[0].mxu0
        %544 = vdwg.mxu0
        %v545 = vmax.f32 %v542, 0.0
        %546 = vmatprep.subr.mxu0 0.0
        %547 = vmatpush1.msra.mxu0 %v395
        %548 = vmatprep.subr.mxu0 0.0
        %549 = vmatpush1.msra.mxu0 %v398
        %550 = vmatprep.subr.mxu0 0.0
        %551 = vmatpush1.msra.mxu0 %v401
        %552 = vmatprep.subr.mxu0 0.0
        %553 = vmatpush1.msra.mxu0 %v404
        %554 = vmatprep.subr.mxu0 0.0
        %555 = vmatpush1.msra.mxu0 %v407
        %556 = vmatprep.subr.mxu0 0.0
        %557 = vmatpush1.msra.mxu0 %v410
        %558 = vmatprep.subr.mxu0 0.0
        %559 = vmatpush1.msra.mxu0 %v413
        %560 = vmatprep.subr.mxu0 0.0
        %561 = vmatpush1.msra.mxu0 %v416
        %562 = vmatprep.subr.mxu0 0.0
        %563 = vmatpush1.msra.mxu0 %v419
        %564 = vmatprep.subr.mxu0 0.0
        %565 = vmatpush1.msra.mxu0 %v422
        %566 = vmatprep.subr.mxu0 0.0
        %567 = vmatpush1.msra.mxu0 %v425
        %568 = vmatprep.subr.mxu0 0.0
        %569 = vmatpush1.msra.mxu0 %v428
        %570 = vmatprep.subr.mxu0 0.0
        %571 = vmatpush1.msra.mxu0 %v431
        %572 = vmatprep.subr.mxu0 0.0
        %573 = vmatpush1.msra.mxu0 %v434
        %574 = vmatprep.subr.mxu0 0.0
        %575 = vmatpush1.msra.mxu0 %v437
        %576 = vmatprep.subr.mxu0 0.0
        %577 = vmatpush1.msra.mxu0 %v440
        %578 = vmatprep.subr.mxu0 0.0
        %579 = vmatpush1.msra.mxu0 0.0
        %580 = vmatprep.subr.mxu0 0.0
        %581 = vmatpush1.msra.mxu0 0.0
        %582 = vmatprep.subr.mxu0 0.0
        %583 = vmatpush1.msra.mxu0 0.0
        %584 = vmatprep.subr.mxu0 0.0
        %585 = vmatpush1.msra.mxu0 0.0
        %586 = vmatprep.subr.mxu0 0.0
        %587 = vmatpush1.msra.mxu0 0.0
        %588 = vmatprep.subr.mxu0 0.0
        %589 = vmatpush1.msra.mxu0 0.0
        %590 = vmatprep.subr.mxu0 0.0
        %591 = vmatpush1.msra.mxu0 0.0
        %592 = vmatprep.subr.mxu0 0.0
        %593 = vmatpush1.msra.mxu0 0.0
        %594 = vmatprep.subr.mxu0 0.0
        %595 = vmatpush1.msra.mxu0 0.0
        %596 = vmatprep.subr.mxu0 0.0
        %597 = vmatpush1.msra.mxu0 0.0
        %598 = vmatprep.subr.mxu0 0.0
        %599 = vmatpush1.msra.mxu0 0.0
        %600 = vmatprep.subr.mxu0 0.0
        %601 = vmatpush1.msra.mxu0 0.0
        %602 = vmatprep.subr.mxu0 0.0
        %603 = vmatpush1.msra.mxu0 0.0
        %604 = vmatprep.subr.mxu0 0.0
        %605 = vmatpush1.msra.mxu0 0.0
        %606 = vmatprep.subr.mxu0 0.0
        %607 = vmatpush1.msra.mxu0 0.0
        %608 = vmatprep.subr.mxu0 0.0
        %609 = vmatpush1.msra.mxu0 0.0
        %610 = vmatprep.mubr.f32.mxu0 0.0
        %611 = vmatmul.mubr.f32.gmra.mrb[0].mxu0 %v441
        %v612 = vpop.f32.mrb[0].mxu0
        %v613 = vadd.f32 %v442, %v612
        %v614 = vpop.f32.mrb[0].mxu0
        %615 = vdwg.mxu0
        %v616 = vmax.f32 %v613, 0.0
        %vm617 = vcmask 64512
        %v619 = vsel %vm617, %v443, 0
        %v622 = vsel %vm617, %v444, 0
        %v625 = vsel %vm617, %v445, 0
        %v628 = vsel %vm617, %v446, 0
        %v631 = vsel %vm617, %v447, 0
        %v634 = vsel %vm617, %v448, 0
        %v637 = vsel %vm617, %v449, 0
        %v640 = vsel %vm617, %v450, 0
        %v643 = vsel %vm617, %v451, 0
        %v646 = vsel %vm617, %v452, 0
        %v649 = vsel %vm617, %v453, 0
        %v652 = vsel %vm617, %v454, 0
        %v655 = vsel %vm617, %v455, 0
        %v658 = vsel %vm617, %v456, 0
        %v661 = vsel %vm617, %v457, 0
        %v664 = vsel %vm617, %v458, 0
        %666 = vmatprep.subr.mxu0 0.0
        %667 = vmatpush1.msra.mxu0 %v616
        %668 = vmatprep.subr.mxu0 0.0
        %669 = vmatpush1.msra.mxu0 0.0
        %670 = vmatprep.subr.mxu0 0.0
        %671 = vmatpush1.msra.mxu0 0.0
        %672 = vmatprep.subr.mxu0 0.0
        %673 = vmatpush1.msra.mxu0 0.0
        %674 = vmatprep.subr.mxu0 0.0
        %675 = vmatpush1.msra.mxu0 0.0
        %676 = vmatprep.subr.mxu0 0.0
        %677 = vmatpush1.msra.mxu0 0.0
        %678 = vmatprep.subr.mxu0 0.0
        %679 = vmatpush1.msra.mxu0 0.0
        %680 = vmatprep.subr.mxu0 0.0
        %681 = vmatpush1.msra.mxu0 0.0
        %682 = vmatprep.subr.mxu0 0.0
        %683 = vmatpush1.msra.mxu0 0.0
        %684 = vmatprep.subr.mxu0 0.0
        %685 = vmatpush1.msra.mxu0 0.0
        %686 = vmatprep.subr.mxu0 0.0
        %687 = vmatpush1.msra.mxu0 0.0
        %688 = vmatprep.subr.mxu0 0.0
        %689 = vmatpush1.msra.mxu0 0.0
        %690 = vmatprep.subr.mxu0 0.0
        %691 = vmatpush1.msra.mxu0 0.0
        %692 = vmatprep.subr.mxu0 0.0
        %693 = vmatpush1.msra.mxu0 0.0
        %694 = vmatprep.subr.mxu0 0.0
        %695 = vmatpush1.msra.mxu0 0.0
        %696 = vmatprep.subr.mxu0 0.0
        %697 = vmatpush1.msra.mxu0 0.0
        %698 = vmatprep.subr.mxu0 0.0
        %699 = vmatpush1.msra.mxu0 0.0
        %700 = vmatprep.subr.mxu0 0.0
        %701 = vmatpush1.msra.mxu0 0.0
        %702 = vmatprep.subr.mxu0 0.0
        %703 = vmatpush1.msra.mxu0 0.0
        %704 = vmatprep.subr.mxu0 0.0
        %705 = vmatpush1.msra.mxu0 0.0
        %706 = vmatprep.subr.mxu0 0.0
        %707 = vmatpush1.msra.mxu0 0.0
        %708 = vmatprep.subr.mxu0 0.0
        %709 = vmatpush1.msra.mxu0 0.0
        %710 = vmatprep.subr.mxu0 0.0
        %711 = vmatpush1.msra.mxu0 0.0
        %712 = vmatprep.subr.mxu0 0.0
        %713 = vmatpush1.msra.mxu0 0.0
        %714 = vmatprep.subr.mxu0 0.0
        %715 = vmatpush1.msra.mxu0 0.0
        %716 = vmatprep.subr.mxu0 0.0
        %717 = vmatpush1.msra.mxu0 0.0
        %718 = vmatprep.subr.mxu0 0.0
        %719 = vmatpush1.msra.mxu0 0.0
        %720 = vmatprep.subr.mxu0 0.0
        %721 = vmatpush1.msra.mxu0 0.0
        %722 = vmatprep.subr.mxu0 0.0
        %723 = vmatpush1.msra.mxu0 0.0
        %724 = vmatprep.subr.mxu0 0.0
        %725 = vmatpush1.msra.mxu0 0.0
        %726 = vmatprep.subr.mxu0 0.0
        %727 = vmatpush1.msra.mxu0 0.0
        %728 = vmatprep.subr.mxu0 0.0
        %729 = vmatpush1.msra.mxu0 0.0
        %730 = vmatprep.mubr.f32.mxu0 0.0
        %731 = vmatmul.mubr.f32.gmra.mrb[0].mxu0 %v619
        %v732 = vpop.f32.mrb[0].mxu0
        %v733 = vadd.f32 0.0, %v732
        %v734 = vpop.f32.mrb[0].mxu0
        %735 = vmatprep.mubr.f32.mxu0 0.0
        %736 = vmatmul.mubr.f32.gmra.mrb[0].mxu0 %v622
        %v737 = vpop.f32.mrb[0].mxu0
        %v738 = vadd.f32 0.0, %v737
        %v739 = vpop.f32.mrb[0].mxu0
        %740 = vmatprep.mubr.f32.mxu0 0.0
        %741 = vmatmul.mubr.f32.gmra.mrb[0].mxu0 %v625
        %v742 = vpop.f32.mrb[0].mxu0
        %v743 = vadd.f32 0.0, %v742
        %v744 = vpop.f32.mrb[0].mxu0
        %745 = vmatprep.mubr.f32.mxu0 0.0
        %746 = vmatmul.mubr.f32.gmra.mrb[0].mxu0 %v628
        %v747 = vpop.f32.mrb[0].mxu0
        %v748 = vadd.f32 0.0, %v747
        %v749 = vpop.f32.mrb[0].mxu0
        %750 = vmatprep.mubr.f32.mxu0 0.0
        %751 = vmatmul.mubr.f32.gmra.mrb[0].mxu0 %v631
        %v752 = vpop.f32.mrb[0].mxu0
        %v753 = vadd.f32 0.0, %v752
        %v754 = vpop.f32.mrb[0].mxu0
        %755 = vmatprep.mubr.f32.mxu0 0.0
        %756 = vmatmul.mubr.f32.gmra.mrb[0].mxu0 %v634
        %v757 = vpop.f32.mrb[0].mxu0
        %v758 = vadd.f32 0.0, %v757
        %v759 = vpop.f32.mrb[0].mxu0
        %760 = vmatprep.mubr.f32.mxu0 0.0
        %761 = vmatmul.mubr.f32.gmra.mrb[0].mxu0 %v637
        %v762 = vpop.f32.mrb[0].mxu0
        %v763 = vadd.f32 0.0, %v762
        %v764 = vpop.f32.mrb[0].mxu0
        %765 = vmatprep.mubr.f32.mxu0 0.0
        %766 = vmatmul.mubr.f32.gmra.mrb[0].mxu0 %v640
        %v767 = vpop.f32.mrb[0].mxu0
        %v768 = vadd.f32 0.0, %v767
        %v769 = vpop.f32.mrb[0].mxu0
        %770 = vmatprep.mubr.f32.mxu0 0.0
        %771 = vmatmul.mubr.f32.gmra.mrb[0].mxu0 %v643
        %v772 = vpop.f32.mrb[0].mxu0
        %v773 = vadd.f32 0.0, %v772
        %v774 = vpop.f32.mrb[0].mxu0
        %775 = vmatprep.mubr.f32.mxu0 0.0
        %776 = vmatmul.mubr.f32.gmra.mrb[0].mxu0 %v646
        %v777 = vpop.f32.mrb[0].mxu0
        %v778 = vadd.f32 0.0, %v777
        %v779 = vpop.f32.mrb[0].mxu0
        %780 = vmatprep.mubr.f32.mxu0 0.0
        %781 = vmatmul.mubr.f32.gmra.mrb[0].mxu0 %v649
        %v782 = vpop.f32.mrb[0].mxu0
        %v783 = vadd.f32 0.0, %v782
        %v784 = vpop.f32.mrb[0].mxu0
        %785 = vmatprep.mubr.f32.mxu0 0.0
        %786 = vmatmul.mubr.f32.gmra.mrb[0].mxu0 %v652
        %v787 = vpop.f32.mrb[0].mxu0
        %v788 = vadd.f32 0.0, %v787
        %v789 = vpop.f32.mrb[0].mxu0
        %790 = vmatprep.mubr.f32.mxu0 0.0
        %791 = vmatmul.mubr.f32.gmra.mrb[0].mxu0 %v655
        %v792 = vpop.f32.mrb[0].mxu0
        %v793 = vadd.f32 0.0, %v792
        %v794 = vpop.f32.mrb[0].mxu0
        %795 = vmatprep.mubr.f32.mxu0 0.0
        %796 = vmatmul.mubr.f32.gmra.mrb[0].mxu0 %v658
        %v797 = vpop.f32.mrb[0].mxu0
        %v798 = vadd.f32 0.0, %v797
        %v799 = vpop.f32.mrb[0].mxu0
        %800 = vmatprep.mubr.f32.mxu0 0.0
        %801 = vmatmul.mubr.f32.gmra.mrb[0].mxu0 %v661
        %v802 = vpop.f32.mrb[0].mxu0
        %v803 = vadd.f32 0.0, %v802
        %v804 = vpop.f32.mrb[0].mxu0
        %805 = vmatprep.mubr.f32.mxu0 0.0
        %806 = vmatmul.mubr.f32.gmra.mrb[0].mxu0 %v664
        %v807 = vpop.f32.mrb[0].mxu0
        %v808 = vadd.f32 0.0, %v807
        %v809 = vpop.f32.mrb[0].mxu0
        %810 = vdwg.mxu0
        %811 = vmatprep.subr.mxu0 0.0
        %812 = vmatpush1.msra.mxu0 %v545
        %813 = vmatprep.subr.mxu0 0.0
        %814 = vmatpush1.msra.mxu0 0.0
        %815 = vmatprep.subr.mxu0 0.0
        %816 = vmatpush1.msra.mxu0 0.0
        %817 = vmatprep.subr.mxu0 0.0
        %818 = vmatpush1.msra.mxu0 0.0
        %819 = vmatprep.subr.mxu0 0.0
        %820 = vmatpush1.msra.mxu0 0.0
        %821 = vmatprep.subr.mxu0 0.0
        %822 = vmatpush1.msra.mxu0 0.0
        %823 = vmatprep.subr.mxu0 0.0
        %824 = vmatpush1.msra.mxu0 0.0
        %825 = vmatprep.subr.mxu0 0.0
        %826 = vmatpush1.msra.mxu0 0.0
        %827 = vmatprep.subr.mxu0 0.0
        %828 = vmatpush1.msra.mxu0 0.0
        %829 = vmatprep.subr.mxu0 0.0
        %830 = vmatpush1.msra.mxu0 0.0
        %831 = vmatprep.subr.mxu0 0.0
        %832 = vmatpush1.msra.mxu0 0.0
        %833 = vmatprep.subr.mxu0 0.0
        %834 = vmatpush1.msra.mxu0 0.0
        %835 = vmatprep.subr.mxu0 0.0
        %836 = vmatpush1.msra.mxu0 0.0
        %837 = vmatprep.subr.mxu0 0.0
        %838 = vmatpush1.msra.mxu0 0.0
        %839 = vmatprep.subr.mxu0 0.0
        %840 = vmatpush1.msra.mxu0 0.0
        %841 = vmatprep.subr.mxu0 0.0
        %842 = vmatpush1.msra.mxu0 0.0
        %843 = vmatprep.subr.mxu0 0.0
        %844 = vmatpush1.msra.mxu0 0.0
        %845 = vmatprep.subr.mxu0 0.0
        %846 = vmatpush1.msra.mxu0 0.0
        %847 = vmatprep.subr.mxu0 0.0
        %848 = vmatpush1.msra.mxu0 0.0
        %849 = vmatprep.subr.mxu0 0.0
        %850 = vmatpush1.msra.mxu0 0.0
        %851 = vmatprep.subr.mxu0 0.0
        %852 = vmatpush1.msra.mxu0 0.0
        %853 = vmatprep.subr.mxu0 0.0
        %854 = vmatpush1.msra.mxu0 0.0
        %855 = vmatprep.subr.mxu0 0.0
        %856 = vmatpush1.msra.mxu0 0.0
        %857 = vmatprep.subr.mxu0 0.0
        %858 = vmatpush1.msra.mxu0 0.0
        %859 = vmatprep.subr.mxu0 0.0
        %860 = vmatpush1.msra.mxu0 0.0
        %861 = vmatprep.subr.mxu0 0.0
        %862 = vmatpush1.msra.mxu0 0.0
        %863 = vmatprep.subr.mxu0 0.0
        %864 = vmatpush1.msra.mxu0 0.0
        %865 = vmatprep.subr.mxu0 0.0
        %866 = vmatpush1.msra.mxu0 0.0
        %867 = vmatprep.subr.mxu0 0.0
        %868 = vmatpush1.msra.mxu0 0.0
        %869 = vmatprep.subr.mxu0 0.0
        %870 = vmatpush1.msra.mxu0 0.0
        %871 = vmatprep.subr.mxu0 0.0
        %872 = vmatpush1.msra.mxu0 0.0
        %873 = vmatprep.subr.mxu0 0.0
        %874 = vmatpush1.msra.mxu0 0.0
        %875 = vmatprep.mubr.f32.mxu0 0.0
        %876 = vmatmul.mubr.f32.gmra.mrb[0].mxu0 %v619
        %v877 = vpop.f32.mrb[0].mxu0
        %v878 = vadd.f32 %v733, %v877
        %v879 = vpop.f32.mrb[0].mxu0
        %880 = vmatprep.mubr.f32.mxu0 0.0
        %881 = vmatmul.mubr.f32.gmra.mrb[0].mxu0 %v622
        %v882 = vpop.f32.mrb[0].mxu0
        %v883 = vadd.f32 %v738, %v882
        %v884 = vpop.f32.mrb[0].mxu0
        %885 = vmatprep.mubr.f32.mxu0 0.0
        %886 = vmatmul.mubr.f32.gmra.mrb[0].mxu0 %v625
        %v887 = vpop.f32.mrb[0].mxu0
        %v888 = vadd.f32 %v743, %v887
        %v889 = vpop.f32.mrb[0].mxu0
        %890 = vmatprep.mubr.f32.mxu0 0.0
        %891 = vmatmul.mubr.f32.gmra.mrb[0].mxu0 %v628
        %v892 = vpop.f32.mrb[0].mxu0
        %v893 = vadd.f32 %v748, %v892
        %v894 = vpop.f32.mrb[0].mxu0
        %895 = vmatprep.mubr.f32.mxu0 0.0
        %896 = vmatmul.mubr.f32.gmra.mrb[0].mxu0 %v631
        %v897 = vpop.f32.mrb[0].mxu0
        %v898 = vadd.f32 %v753, %v897
        %v899 = vpop.f32.mrb[0].mxu0
        %900 = vmatprep.mubr.f32.mxu0 0.0
        %901 = vmatmul.mubr.f32.gmra.mrb[0].mxu0 %v634
        %v902 = vpop.f32.mrb[0].mxu0
        %v903 = vadd.f32 %v758, %v902
        %v904 = vpop.f32.mrb[0].mxu0
        %905 = vmatprep.mubr.f32.mxu0 0.0
        %906 = vmatmul.mubr.f32.gmra.mrb[0].mxu0 %v637
        %v907 = vpop.f32.mrb[0].mxu0
        %v908 = vadd.f32 %v763, %v907
        %v909 = vpop.f32.mrb[0].mxu0
        %910 = vmatprep.mubr.f32.mxu0 0.0
        %911 = vmatmul.mubr.f32.gmra.mrb[0].mxu0 %v640
        %v912 = vpop.f32.mrb[0].mxu0
        %v913 = vadd.f32 %v768, %v912
        %v914 = vpop.f32.mrb[0].mxu0
        %915 = vmatprep.mubr.f32.mxu0 0.0
        %916 = vmatmul.mubr.f32.gmra.mrb[0].mxu0 %v643
        %v917 = vpop.f32.mrb[0].mxu0
        %v918 = vadd.f32 %v773, %v917
        %v919 = vpop.f32.mrb[0].mxu0
        %920 = vmatprep.mubr.f32.mxu0 0.0
        %921 = vmatmul.mubr.f32.gmra.mrb[0].mxu0 %v646
        %v922 = vpop.f32.mrb[0].mxu0
        %v923 = vadd.f32 %v778, %v922
        %v924 = vpop.f32.mrb[0].mxu0
        %925 = vmatprep.mubr.f32.mxu0 0.0
        %926 = vmatmul.mubr.f32.gmra.mrb[0].mxu0 %v649
        %v927 = vpop.f32.mrb[0].mxu0
        %v928 = vadd.f32 %v783, %v927
        %v929 = vpop.f32.mrb[0].mxu0
        %930 = vmatprep.mubr.f32.mxu0 0.0
        %931 = vmatmul.mubr.f32.gmra.mrb[0].mxu0 %v652
        %v932 = vpop.f32.mrb[0].mxu0
        %v933 = vadd.f32 %v788, %v932
        %v934 = vpop.f32.mrb[0].mxu0
        %935 = vmatprep.mubr.f32.mxu0 0.0
        %936 = vmatmul.mubr.f32.gmra.mrb[0].mxu0 %v655
        %v937 = vpop.f32.mrb[0].mxu0
        %v938 = vadd.f32 %v793, %v937
        %v939 = vpop.f32.mrb[0].mxu0
        %940 = vmatprep.mubr.f32.mxu0 0.0
        %941 = vmatmul.mubr.f32.gmra.mrb[0].mxu0 %v658
        %v942 = vpop.f32.mrb[0].mxu0
        %v943 = vadd.f32 %v798, %v942
        %v944 = vpop.f32.mrb[0].mxu0
        %945 = vmatprep.mubr.f32.mxu0 0.0
        %946 = vmatmul.mubr.f32.gmra.mrb[0].mxu0 %v661
        %v947 = vpop.f32.mrb[0].mxu0
        %v948 = vadd.f32 %v803, %v947
        %v949 = vpop.f32.mrb[0].mxu0
        %950 = vmatprep.mubr.f32.mxu0 0.0
        %951 = vmatmul.mubr.f32.gmra.mrb[0].mxu0 %v664
        %v952 = vpop.f32.mrb[0].mxu0
        %v953 = vadd.f32 %v808, %v952
        %v954 = vpop.f32.mrb[0].mxu0
        %955 = vdwg.mxu0
        %v956 = vmul.f32 %v459, 2.0
        %v957 = vmul.f32 %v460, 2.0
        %v958 = vmul.f32 %v461, 2.0
        %v959 = vmul.f32 %v462, 2.0
        %v960 = vmul.f32 %v463, 2.0
        %v961 = vmul.f32 %v464, 2.0
        %v962 = vmul.f32 %v465, 2.0
        %v963 = vmul.f32 %v466, 2.0
        %v964 = vmul.f32 %v467, 2.0
        %v965 = vmul.f32 %v468, 2.0
        %v966 = vmul.f32 %v469, 2.0
        %v967 = vmul.f32 %v470, 2.0
        %v968 = vmul.f32 %v471, 2.0
        %v969 = vmul.f32 %v472, 2.0
        %v970 = vmul.f32 %v473, 2.0
        %v971 = vmul.f32 %v474, 2.0
        %v972 = vadd.f32 %v878, %v956
        %v973 = vadd.f32 %v883, %v957
        %v974 = vadd.f32 %v888, %v958
        %v975 = vadd.f32 %v893, %v959
        %v976 = vadd.f32 %v898, %v960
        %v977 = vadd.f32 %v903, %v961
        %v978 = vadd.f32 %v908, %v962
        %v979 = vadd.f32 %v913, %v963
        %v980 = vadd.f32 %v918, %v964
        %v981 = vadd.f32 %v923, %v965
        %v982 = vadd.f32 %v928, %v966
        %v983 = vadd.f32 %v933, %v967
        %v984 = vadd.f32 %v938, %v968
        %v985 = vadd.f32 %v943, %v969
        %v986 = vadd.f32 %v948, %v970
        %v987 = vadd.f32 %v953, %v971
        %v988 = vxor.u32 %v972, 2147483648
        %v989 = vxor.u32 %v973, 2147483648
        %v990 = vxor.u32 %v974, 2147483648
        %v991 = vxor.u32 %v975, 2147483648
        %v992 = vxor.u32 %v976, 2147483648
        %v993 = vxor.u32 %v977, 2147483648
        %v994 = vxor.u32 %v978, 2147483648
        %v995 = vxor.u32 %v979, 2147483648
        %v996 = vxor.u32 %v980, 2147483648
        %v997 = vxor.u32 %v981, 2147483648
        %v998 = vxor.u32 %v982, 2147483648
        %v999 = vxor.u32 %v983, 2147483648
        %v1000 = vxor.u32 %v984, 2147483648
        %v1001 = vxor.u32 %v985, 2147483648
        %v1002 = vxor.u32 %v986, 2147483648
        %v1003 = vxor.u32 %v987, 2147483648
        %v1004 = vmul.f32 %v988, 1.442695
        %v1005 = vpow.pop %v1004
        %v1006 = vmul.f32 %v989, 1.442695
        %v1007 = vpow.pop %v1006
        %v1008 = vmul.f32 %v990, 1.442695
        %v1009 = vpow.pop %v1008
        %v1010 = vmul.f32 %v991, 1.442695
        %v1011 = vpow.pop %v1010
        %v1012 = vmul.f32 %v992, 1.442695
        %v1013 = vpow.pop %v1012
        %v1014 = vmul.f32 %v993, 1.442695
        %v1015 = vpow.pop %v1014
        %v1016 = vmul.f32 %v994, 1.442695
        %v1017 = vpow.pop %v1016
        %v1018 = vmul.f32 %v995, 1.442695
        %v1019 = vpow.pop %v1018
        %v1020 = vmul.f32 %v996, 1.442695
        %v1021 = vpow.pop %v1020
        %v1022 = vmul.f32 %v997, 1.442695
        %v1023 = vpow.pop %v1022
        %v1024 = vmul.f32 %v998, 1.442695
        %v1025 = vpow.pop %v1024
        %v1026 = vmul.f32 %v999, 1.442695
        %v1027 = vpow.pop %v1026
        %v1028 = vmul.f32 %v1000, 1.442695
        %v1029 = vpow.pop %v1028
        %v1030 = vmul.f32 %v1001, 1.442695
        %v1031 = vpow.pop %v1030
        %v1032 = vmul.f32 %v1002, 1.442695
        %v1033 = vpow.pop %v1032
        %v1034 = vmul.f32 %v1003, 1.442695
        %v1035 = vpow.pop %v1034
        %v1036 = vadd.f32 %v1005, 1.0
        %v1037 = vadd.f32 %v1007, 1.0
        %v1038 = vadd.f32 %v1009, 1.0
        %v1039 = vadd.f32 %v1011, 1.0
        %v1040 = vadd.f32 %v1013, 1.0
        %v1041 = vadd.f32 %v1015, 1.0
        %v1042 = vadd.f32 %v1017, 1.0
        %v1043 = vadd.f32 %v1019, 1.0
        %v1044 = vadd.f32 %v1021, 1.0
        %v1045 = vadd.f32 %v1023, 1.0
        %v1046 = vadd.f32 %v1025, 1.0
        %v1047 = vadd.f32 %v1027, 1.0
        %v1048 = vadd.f32 %v1029, 1.0
        %v1049 = vadd.f32 %v1031, 1.0
        %v1050 = vadd.f32 %v1033, 1.0
        %v1051 = vadd.f32 %v1035, 1.0
        %v1052 = vrcp.pop %v1036
        %v1053 = vmul.f32 1.0, %v1052
        %v1054 = vrcp.pop %v1037
        %v1055 = vmul.f32 1.0, %v1054
        %v1056 = vrcp.pop %v1038
        %v1057 = vmul.f32 1.0, %v1056
        %v1058 = vrcp.pop %v1039
        %v1059 = vmul.f32 1.0, %v1058
        %v1060 = vrcp.pop %v1040
        %v1061 = vmul.f32 1.0, %v1060
        %v1062 = vrcp.pop %v1041
        %v1063 = vmul.f32 1.0, %v1062
        %v1064 = vrcp.pop %v1042
        %v1065 = vmul.f32 1.0, %v1064
        %v1066 = vrcp.pop %v1043
        %v1067 = vmul.f32 1.0, %v1066
        %v1068 = vrcp.pop %v1044
        %v1069 = vmul.f32 1.0, %v1068
        %v1070 = vrcp.pop %v1045
        %v1071 = vmul.f32 1.0, %v1070
        %v1072 = vrcp.pop %v1046
        %v1073 = vmul.f32 1.0, %v1072
        %v1074 = vrcp.pop %v1047
        %v1075 = vmul.f32 1.0, %v1074
        %v1076 = vrcp.pop %v1048
        %v1077 = vmul.f32 1.0, %v1076
        %v1078 = vrcp.pop %v1049
        %v1079 = vmul.f32 1.0, %v1078
        %v1080 = vrcp.pop %v1050
        %v1081 = vmul.f32 1.0, %v1080
        %v1082 = vrcp.pop %v1051
        %v1083 = vmul.f32 1.0, %v1082
        %1085 = vset.pattern.permute.xlu0 0
        %1086 = vperm.xlu0 %1085, %v1053
        %v1087 = vpop.permute.xlu0 %1086
        %1090 = vset.pattern.permute.xlu0 0
        %1091 = vperm.xlu0 %1090, %v1055
        %v1092 = vpop.permute.xlu0 %1091
        %1095 = vset.pattern.permute.xlu0 0
        %1096 = vperm.xlu0 %1095, %v1057
        %v1097 = vpop.permute.xlu0 %1096
        %1100 = vset.pattern.permute.xlu0 0
        %1101 = vperm.xlu0 %1100, %v1059
        %v1102 = vpop.permute.xlu0 %1101
        %1105 = vset.pattern.permute.xlu0 0
        %1106 = vperm.xlu0 %1105, %v1061
        %v1107 = vpop.permute.xlu0 %1106
        %1110 = vset.pattern.permute.xlu0 0
        %1111 = vperm.xlu0 %1110, %v1063
        %v1112 = vpop.permute.xlu0 %1111
        %1115 = vset.pattern.permute.xlu0 0
        %1116 = vperm.xlu0 %1115, %v1065
        %v1117 = vpop.permute.xlu0 %1116
        %1120 = vset.pattern.permute.xlu0 0
        %1121 = vperm.xlu0 %1120, %v1067
        %v1122 = vpop.permute.xlu0 %1121
        %1125 = vset.pattern.permute.xlu0 0
        %1126 = vperm.xlu0 %1125, %v1069
        %v1127 = vpop.permute.xlu0 %1126
        %1130 = vset.pattern.permute.xlu0 0
        %1131 = vperm.xlu0 %1130, %v1071
        %v1132 = vpop.permute.xlu0 %1131
        %1135 = vset.pattern.permute.xlu0 0
        %1136 = vperm.xlu0 %1135, %v1073
        %v1137 = vpop.permute.xlu0 %1136
        %1140 = vset.pattern.permute.xlu0 0
        %1141 = vperm.xlu0 %1140, %v1075
        %v1142 = vpop.permute.xlu0 %1141
        %1145 = vset.pattern.permute.xlu0 0
        %1146 = vperm.xlu0 %1145, %v1077
        %v1147 = vpop.permute.xlu0 %1146
        %1150 = vset.pattern.permute.xlu0 0
        %1151 = vperm.xlu0 %1150, %v1079
        %v1152 = vpop.permute.xlu0 %1151
        %1155 = vset.pattern.permute.xlu0 0
        %1156 = vperm.xlu0 %1155, %v1081
        %v1157 = vpop.permute.xlu0 %1156
        %1160 = vset.pattern.permute.xlu0 0
        %1161 = vperm.xlu0 %1160, %v1083
        %v1162 = vpop.permute.xlu0 %1161
        %v1164 = vmul.f32 %v297, %v1087
        %v1165 = vmul.f32 %v298, %v1087
        %v1166 = vmul.f32 %v299, %v1092
        %v1167 = vmul.f32 %v300, %v1092
        %v1168 = vmul.f32 %v301, %v1097
        %v1169 = vmul.f32 %v302, %v1097
        %v1170 = vmul.f32 %v303, %v1102
        %v1171 = vmul.f32 %v304, %v1102
        %v1172 = vmul.f32 %v305, %v1107
        %v1173 = vmul.f32 %v306, %v1107
        %v1174 = vmul.f32 %v307, %v1112
        %v1175 = vmul.f32 %v308, %v1112
        %v1176 = vmul.f32 %v309, %v1117
        %v1177 = vmul.f32 %v310, %v1117
        %v1178 = vmul.f32 %v311, %v1122
        %v1179 = vmul.f32 %v312, %v1122
        %v1180 = vmul.f32 %v313, %v1127
        %v1181 = vmul.f32 %v314, %v1127
        %v1182 = vmul.f32 %v315, %v1132
        %v1183 = vmul.f32 %v316, %v1132
        %v1184 = vmul.f32 %v317, %v1137
        %v1185 = vmul.f32 %v318, %v1137
        %v1186 = vmul.f32 %v319, %v1142
        %v1187 = vmul.f32 %v320, %v1142
        %v1188 = vmul.f32 %v321, %v1147
        %v1189 = vmul.f32 %v322, %v1147
        %v1190 = vmul.f32 %v323, %v1152
        %v1191 = vmul.f32 %v324, %v1152
        %v1192 = vmul.f32 %v325, %v1157
        %v1193 = vmul.f32 %v326, %v1157
        %v1194 = vmul.f32 %v327, %v1162
        %v1195 = vmul.f32 %v328, %v1162
        %v1196 = vld [vmem:[%s5] sm:$0xff]
        %1197 = vmatprep.subr.mxu0 %v1165
        %1198 = vmatpush1.msra.mxu0 %v1164
        %1199 = vmatprep.subr.mxu0 %v1167
        %1200 = vmatpush1.msra.mxu0 %v1166
        %1201 = vmatprep.subr.mxu0 %v1169
        %1202 = vmatpush1.msra.mxu0 %v1168
        %1203 = vmatprep.subr.mxu0 %v1171
        %1204 = vmatpush1.msra.mxu0 %v1170
        %1205 = vmatprep.subr.mxu0 %v1173
        %1206 = vmatpush1.msra.mxu0 %v1172
        %1207 = vmatprep.subr.mxu0 %v1175
        %1208 = vmatpush1.msra.mxu0 %v1174
        %1209 = vmatprep.subr.mxu0 %v1177
        %1210 = vmatpush1.msra.mxu0 %v1176
        %1211 = vmatprep.subr.mxu0 %v1179
        %1212 = vmatpush1.msra.mxu0 %v1178
        %1213 = vmatprep.subr.mxu0 %v1181
        %1214 = vmatpush1.msra.mxu0 %v1180
        %1215 = vmatprep.subr.mxu0 %v1183
        %1216 = vmatpush1.msra.mxu0 %v1182
        %1217 = vmatprep.subr.mxu0 %v1185
        %1218 = vmatpush1.msra.mxu0 %v1184
        %1219 = vmatprep.subr.mxu0 %v1187
        %1220 = vmatpush1.msra.mxu0 %v1186
        %1221 = vmatprep.subr.mxu0 %v1189
        %1222 = vmatpush1.msra.mxu0 %v1188
        %1223 = vmatprep.subr.mxu0 %v1191
        %1224 = vmatpush1.msra.mxu0 %v1190
        %1225 = vmatprep.subr.mxu0 %v1193
        %1226 = vmatpush1.msra.mxu0 %v1192
        %1227 = vmatprep.subr.mxu0 %v1195
        %1228 = vmatpush1.msra.mxu0 %v1194
        %1229 = vmatprep.subr.mxu0 0.0
        %1230 = vmatpush1.msra.mxu0 0.0
        %1231 = vmatprep.subr.mxu0 0.0
        %1232 = vmatpush1.msra.mxu0 0.0
        %1233 = vmatprep.subr.mxu0 0.0
        %1234 = vmatpush1.msra.mxu0 0.0
        %1235 = vmatprep.subr.mxu0 0.0
        %1236 = vmatpush1.msra.mxu0 0.0
        %1237 = vmatprep.subr.mxu0 0.0
        %1238 = vmatpush1.msra.mxu0 0.0
        %1239 = vmatprep.subr.mxu0 0.0
        %1240 = vmatpush1.msra.mxu0 0.0
        %1241 = vmatprep.subr.mxu0 0.0
        %1242 = vmatpush1.msra.mxu0 0.0
        %1243 = vmatprep.subr.mxu0 0.0
        %1244 = vmatpush1.msra.mxu0 0.0
        %1245 = vmatprep.subr.mxu0 0.0
        %1246 = vmatpush1.msra.mxu0 0.0
        %1247 = vmatprep.subr.mxu0 0.0
        %1248 = vmatpush1.msra.mxu0 0.0
        %1249 = vmatprep.subr.mxu0 0.0
        %1250 = vmatpush1.msra.mxu0 0.0
        %1251 = vmatprep.subr.mxu0 0.0
        %1252 = vmatpush1.msra.mxu0 0.0
        %1253 = vmatprep.subr.mxu0 0.0
        %1254 = vmatpush1.msra.mxu0 0.0
        %1255 = vmatprep.subr.mxu0 0.0
        %1256 = vmatpush1.msra.mxu0 0.0
        %1257 = vmatprep.subr.mxu0 0.0
        %1258 = vmatpush1.msra.mxu0 0.0
        %1259 = vmatprep.subr.mxu0 0.0
        %1260 = vmatpush1.msra.mxu0 0.0
        %1261 = vmatprep.mubr.f32.mxu0 0.0
        %1262 = vmatmul.mubr.f32.gmra.mrb[0].mxu0 %v1196
        %v1263 = vpop.f32.mrb[0].mxu0
        %v1264 = vadd.f32 0.0, %v1263
        %v1265 = vpop.f32.mrb[0].mxu0
        %v1266 = vadd.f32 0.0, %v1265
        %1267 = vdwg.mxu0
        %v1268 = vmax.f32 %v1264, 0.0
        %v1269 = vmax.f32 %v1266, 0.0
        %v1270 = vld [vmem:[%s6] sm:$0xff]
        %v1271 = vld [vmem:[%s6 + $0x8] sm:$0xff]
        %v1272 = vld [vmem:[%s6 + $0x10] sm:$0xff]
        %v1273 = vld [vmem:[%s6 + $0x18] sm:$0xff]
        %v1274 = vld [vmem:[%s6 + $0x20] sm:$0xff]
        %v1275 = vld [vmem:[%s6 + $0x28] sm:$0xff]
        %v1276 = vld [vmem:[%s6 + $0x30] sm:$0xff]
        %v1277 = vld [vmem:[%s6 + $0x38] sm:$0xff]
        %v1278 = vld [vmem:[%s6 + $0x40] sm:$0xff]
        %v1279 = vld [vmem:[%s6 + $0x48] sm:$0xff]
        %v1280 = vld [vmem:[%s6 + $0x50] sm:$0xff]
        %v1281 = vld [vmem:[%s6 + $0x58] sm:$0xff]
        %v1282 = vld [vmem:[%s6 + $0x60] sm:$0xff]
        %v1283 = vld [vmem:[%s6 + $0x68] sm:$0xff]
        %v1284 = vld [vmem:[%s6 + $0x70] sm:$0xff]
        %v1285 = vld [vmem:[%s6 + $0x78] sm:$0xff]
        %v1287 = vsel %vm617, %v1270, 0
        %v1290 = vsel %vm617, %v1271, 0
        %v1293 = vsel %vm617, %v1272, 0
        %v1296 = vsel %vm617, %v1273, 0
        %v1299 = vsel %vm617, %v1274, 0
        %v1302 = vsel %vm617, %v1275, 0
        %v1305 = vsel %vm617, %v1276, 0
        %v1308 = vsel %vm617, %v1277, 0
        %v1311 = vsel %vm617, %v1278, 0
        %v1314 = vsel %vm617, %v1279, 0
        %v1317 = vsel %vm617, %v1280, 0
        %v1320 = vsel %vm617, %v1281, 0
        %v1323 = vsel %vm617, %v1282, 0
        %v1326 = vsel %vm617, %v1283, 0
        %v1329 = vsel %vm617, %v1284, 0
        %v1332 = vsel %vm617, %v1285, 0
        %1334 = vmatprep.subr.mxu0 %v1269
        %1335 = vmatpush1.msra.mxu0 %v1268
        %1336 = vmatprep.subr.mxu0 0.0
        %1337 = vmatpush1.msra.mxu0 0.0
        %1338 = vmatprep.subr.mxu0 0.0
        %1339 = vmatpush1.msra.mxu0 0.0
        %1340 = vmatprep.subr.mxu0 0.0
        %1341 = vmatpush1.msra.mxu0 0.0
        %1342 = vmatprep.subr.mxu0 0.0
        %1343 = vmatpush1.msra.mxu0 0.0
        %1344 = vmatprep.subr.mxu0 0.0
        %1345 = vmatpush1.msra.mxu0 0.0
        %1346 = vmatprep.subr.mxu0 0.0
        %1347 = vmatpush1.msra.mxu0 0.0
        %1348 = vmatprep.subr.mxu0 0.0
        %1349 = vmatpush1.msra.mxu0 0.0
        %1350 = vmatprep.subr.mxu0 0.0
        %1351 = vmatpush1.msra.mxu0 0.0
        %1352 = vmatprep.subr.mxu0 0.0
        %1353 = vmatpush1.msra.mxu0 0.0
        %1354 = vmatprep.subr.mxu0 0.0
        %1355 = vmatpush1.msra.mxu0 0.0
        %1356 = vmatprep.subr.mxu0 0.0
        %1357 = vmatpush1.msra.mxu0 0.0
        %1358 = vmatprep.subr.mxu0 0.0
        %1359 = vmatpush1.msra.mxu0 0.0
        %1360 = vmatprep.subr.mxu0 0.0
        %1361 = vmatpush1.msra.mxu0 0.0
        %1362 = vmatprep.subr.mxu0 0.0
        %1363 = vmatpush1.msra.mxu0 0.0
        %1364 = vmatprep.subr.mxu0 0.0
        %1365 = vmatpush1.msra.mxu0 0.0
        %1366 = vmatprep.subr.mxu0 0.0
        %1367 = vmatpush1.msra.mxu0 0.0
        %1368 = vmatprep.subr.mxu0 0.0
        %1369 = vmatpush1.msra.mxu0 0.0
        %1370 = vmatprep.subr.mxu0 0.0
        %1371 = vmatpush1.msra.mxu0 0.0
        %1372 = vmatprep.subr.mxu0 0.0
        %1373 = vmatpush1.msra.mxu0 0.0
        %1374 = vmatprep.subr.mxu0 0.0
        %1375 = vmatpush1.msra.mxu0 0.0
        %1376 = vmatprep.subr.mxu0 0.0
        %1377 = vmatpush1.msra.mxu0 0.0
        %1378 = vmatprep.subr.mxu0 0.0
        %1379 = vmatpush1.msra.mxu0 0.0
        %1380 = vmatprep.subr.mxu0 0.0
        %1381 = vmatpush1.msra.mxu0 0.0
        %1382 = vmatprep.subr.mxu0 0.0
        %1383 = vmatpush1.msra.mxu0 0.0
        %1384 = vmatprep.subr.mxu0 0.0
        %1385 = vmatpush1.msra.mxu0 0.0
        %1386 = vmatprep.subr.mxu0 0.0
        %1387 = vmatpush1.msra.mxu0 0.0
        %1388 = vmatprep.subr.mxu0 0.0
        %1389 = vmatpush1.msra.mxu0 0.0
        %1390 = vmatprep.subr.mxu0 0.0
        %1391 = vmatpush1.msra.mxu0 0.0
        %1392 = vmatprep.subr.mxu0 0.0
        %1393 = vmatpush1.msra.mxu0 0.0
        %1394 = vmatprep.subr.mxu0 0.0
        %1395 = vmatpush1.msra.mxu0 0.0
        %1396 = vmatprep.subr.mxu0 0.0
        %1397 = vmatpush1.msra.mxu0 0.0
        %1398 = vmatprep.mubr.f32.mxu0 0.0
        %1399 = vmatmul.mubr.f32.gmra.mrb[0].mxu0 %v1287
        %v1400 = vpop.f32.mrb[0].mxu0
        %v1401 = vadd.f32 0.0, %v1400
        %v1402 = vpop.f32.mrb[0].mxu0
        %v1403 = vadd.f32 0.0, %v1402
        %1404 = vmatprep.mubr.f32.mxu0 0.0
        %1405 = vmatmul.mubr.f32.gmra.mrb[0].mxu0 %v1290
        %v1406 = vpop.f32.mrb[0].mxu0
        %v1407 = vadd.f32 0.0, %v1406
        %v1408 = vpop.f32.mrb[0].mxu0
        %v1409 = vadd.f32 0.0, %v1408
        %1410 = vmatprep.mubr.f32.mxu0 0.0
        %1411 = vmatmul.mubr.f32.gmra.mrb[0].mxu0 %v1293
        %v1412 = vpop.f32.mrb[0].mxu0
        %v1413 = vadd.f32 0.0, %v1412
        %v1414 = vpop.f32.mrb[0].mxu0
        %v1415 = vadd.f32 0.0, %v1414
        %1416 = vmatprep.mubr.f32.mxu0 0.0
        %1417 = vmatmul.mubr.f32.gmra.mrb[0].mxu0 %v1296
        %v1418 = vpop.f32.mrb[0].mxu0
        %v1419 = vadd.f32 0.0, %v1418
        %v1420 = vpop.f32.mrb[0].mxu0
        %v1421 = vadd.f32 0.0, %v1420
        %1422 = vmatprep.mubr.f32.mxu0 0.0
        %1423 = vmatmul.mubr.f32.gmra.mrb[0].mxu0 %v1299
        %v1424 = vpop.f32.mrb[0].mxu0
        %v1425 = vadd.f32 0.0, %v1424
        %v1426 = vpop.f32.mrb[0].mxu0
        %v1427 = vadd.f32 0.0, %v1426
        %1428 = vmatprep.mubr.f32.mxu0 0.0
        %1429 = vmatmul.mubr.f32.gmra.mrb[0].mxu0 %v1302
        %v1430 = vpop.f32.mrb[0].mxu0
        %v1431 = vadd.f32 0.0, %v1430
        %v1432 = vpop.f32.mrb[0].mxu0
        %v1433 = vadd.f32 0.0, %v1432
        %1434 = vmatprep.mubr.f32.mxu0 0.0
        %1435 = vmatmul.mubr.f32.gmra.mrb[0].mxu0 %v1305
        %v1436 = vpop.f32.mrb[0].mxu0
        %v1437 = vadd.f32 0.0, %v1436
        %v1438 = vpop.f32.mrb[0].mxu0
        %v1439 = vadd.f32 0.0, %v1438
        %1440 = vmatprep.mubr.f32.mxu0 0.0
        %1441 = vmatmul.mubr.f32.gmra.mrb[0].mxu0 %v1308
        %v1442 = vpop.f32.mrb[0].mxu0
        %v1443 = vadd.f32 0.0, %v1442
        %v1444 = vpop.f32.mrb[0].mxu0
        %v1445 = vadd.f32 0.0, %v1444
        %1446 = vmatprep.mubr.f32.mxu0 0.0
        %1447 = vmatmul.mubr.f32.gmra.mrb[0].mxu0 %v1311
        %v1448 = vpop.f32.mrb[0].mxu0
        %v1449 = vadd.f32 0.0, %v1448
        %v1450 = vpop.f32.mrb[0].mxu0
        %v1451 = vadd.f32 0.0, %v1450
        %1452 = vmatprep.mubr.f32.mxu0 0.0
        %1453 = vmatmul.mubr.f32.gmra.mrb[0].mxu0 %v1314
        %v1454 = vpop.f32.mrb[0].mxu0
        %v1455 = vadd.f32 0.0, %v1454
        %v1456 = vpop.f32.mrb[0].mxu0
        %v1457 = vadd.f32 0.0, %v1456
        %1458 = vmatprep.mubr.f32.mxu0 0.0
        %1459 = vmatmul.mubr.f32.gmra.mrb[0].mxu0 %v1317
        %v1460 = vpop.f32.mrb[0].mxu0
        %v1461 = vadd.f32 0.0, %v1460
        %v1462 = vpop.f32.mrb[0].mxu0
        %v1463 = vadd.f32 0.0, %v1462
        %1464 = vmatprep.mubr.f32.mxu0 0.0
        %1465 = vmatmul.mubr.f32.gmra.mrb[0].mxu0 %v1320
        %v1466 = vpop.f32.mrb[0].mxu0
        %v1467 = vadd.f32 0.0, %v1466
        %v1468 = vpop.f32.mrb[0].mxu0
        %v1469 = vadd.f32 0.0, %v1468
        %1470 = vmatprep.mubr.f32.mxu0 0.0
        %1471 = vmatmul.mubr.f32.gmra.mrb[0].mxu0 %v1323
        %v1472 = vpop.f32.mrb[0].mxu0
        %v1473 = vadd.f32 0.0, %v1472
        %v1474 = vpop.f32.mrb[0].mxu0
        %v1475 = vadd.f32 0.0, %v1474
        %1476 = vmatprep.mubr.f32.mxu0 0.0
        %1477 = vmatmul.mubr.f32.gmra.mrb[0].mxu0 %v1326
        %v1478 = vpop.f32.mrb[0].mxu0
        %v1479 = vadd.f32 0.0, %v1478
        %v1480 = vpop.f32.mrb[0].mxu0
        %v1481 = vadd.f32 0.0, %v1480
        %1482 = vmatprep.mubr.f32.mxu0 0.0
        %1483 = vmatmul.mubr.f32.gmra.mrb[0].mxu0 %v1329
        %v1484 = vpop.f32.mrb[0].mxu0
        %v1485 = vadd.f32 0.0, %v1484
        %v1486 = vpop.f32.mrb[0].mxu0
        %v1487 = vadd.f32 0.0, %v1486
        %1488 = vmatprep.mubr.f32.mxu0 0.0
        %1489 = vmatmul.mubr.f32.gmra.mrb[0].mxu0 %v1332
        %v1490 = vpop.f32.mrb[0].mxu0
        %v1491 = vadd.f32 0.0, %v1490
        %v1492 = vpop.f32.mrb[0].mxu0
        %v1493 = vadd.f32 0.0, %v1492
        %1494 = vdwg.mxu0
        %v1495 = vxor.u32 %v1401, 2147483648
        %v1496 = vxor.u32 %v1403, 2147483648
        %v1497 = vxor.u32 %v1407, 2147483648
        %v1498 = vxor.u32 %v1409, 2147483648
        %v1499 = vxor.u32 %v1413, 2147483648
        %v1500 = vxor.u32 %v1415, 2147483648
        %v1501 = vxor.u32 %v1419, 2147483648
        %v1502 = vxor.u32 %v1421, 2147483648
        %v1503 = vxor.u32 %v1425, 2147483648
        %v1504 = vxor.u32 %v1427, 2147483648
        %v1505 = vxor.u32 %v1431, 2147483648
        %v1506 = vxor.u32 %v1433, 2147483648
        %v1507 = vxor.u32 %v1437, 2147483648
        %v1508 = vxor.u32 %v1439, 2147483648
        %v1509 = vxor.u32 %v1443, 2147483648
        %v1510 = vxor.u32 %v1445, 2147483648
        %v1511 = vxor.u32 %v1449, 2147483648
        %v1512 = vxor.u32 %v1451, 2147483648
        %v1513 = vxor.u32 %v1455, 2147483648
        %v1514 = vxor.u32 %v1457, 2147483648
        %v1515 = vxor.u32 %v1461, 2147483648
        %v1516 = vxor.u32 %v1463, 2147483648
        %v1517 = vxor.u32 %v1467, 2147483648
        %v1518 = vxor.u32 %v1469, 2147483648
        %v1519 = vxor.u32 %v1473, 2147483648
        %v1520 = vxor.u32 %v1475, 2147483648
        %v1521 = vxor.u32 %v1479, 2147483648
        %v1522 = vxor.u32 %v1481, 2147483648
        %v1523 = vxor.u32 %v1485, 2147483648
        %v1524 = vxor.u32 %v1487, 2147483648
        %v1525 = vxor.u32 %v1491, 2147483648
        %v1526 = vxor.u32 %v1493, 2147483648
        %v1527 = vmul.f32 %v1495, 1.442695
        %v1528 = vpow.pop %v1527
        %v1529 = vmul.f32 %v1496, 1.442695
        %v1530 = vpow.pop %v1529
        %v1531 = vmul.f32 %v1497, 1.442695
        %v1532 = vpow.pop %v1531
        %v1533 = vmul.f32 %v1498, 1.442695
        %v1534 = vpow.pop %v1533
        %v1535 = vmul.f32 %v1499, 1.442695
        %v1536 = vpow.pop %v1535
        %v1537 = vmul.f32 %v1500, 1.442695
        %v1538 = vpow.pop %v1537
        %v1539 = vmul.f32 %v1501, 1.442695
        %v1540 = vpow.pop %v1539
        %v1541 = vmul.f32 %v1502, 1.442695
        %v1542 = vpow.pop %v1541
        %v1543 = vmul.f32 %v1503, 1.442695
        %v1544 = vpow.pop %v1543
        %v1545 = vmul.f32 %v1504, 1.442695
        %v1546 = vpow.pop %v1545
        %v1547 = vmul.f32 %v1505, 1.442695
        %v1548 = vpow.pop %v1547
        %v1549 = vmul.f32 %v1506, 1.442695
        %v1550 = vpow.pop %v1549
        %v1551 = vmul.f32 %v1507, 1.442695
        %v1552 = vpow.pop %v1551
        %v1553 = vmul.f32 %v1508, 1.442695
        %v1554 = vpow.pop %v1553
        %v1555 = vmul.f32 %v1509, 1.442695
        %v1556 = vpow.pop %v1555
        %v1557 = vmul.f32 %v1510, 1.442695
        %v1558 = vpow.pop %v1557
        %v1559 = vmul.f32 %v1511, 1.442695
        %v1560 = vpow.pop %v1559
        %v1561 = vmul.f32 %v1512, 1.442695
        %v1562 = vpow.pop %v1561
        %v1563 = vmul.f32 %v1513, 1.442695
        %v1564 = vpow.pop %v1563
        %v1565 = vmul.f32 %v1514, 1.442695
        %v1566 = vpow.pop %v1565
        %v1567 = vmul.f32 %v1515, 1.442695
        %v1568 = vpow.pop %v1567
        %v1569 = vmul.f32 %v1516, 1.442695
        %v1570 = vpow.pop %v1569
        %v1571 = vmul.f32 %v1517, 1.442695
        %v1572 = vpow.pop %v1571
        %v1573 = vmul.f32 %v1518, 1.442695
        %v1574 = vpow.pop %v1573
        %v1575 = vmul.f32 %v1519, 1.442695
        %v1576 = vpow.pop %v1575
        %v1577 = vmul.f32 %v1520, 1.442695
        %v1578 = vpow.pop %v1577
        %v1579 = vmul.f32 %v1521, 1.442695
        %v1580 = vpow.pop %v1579
        %v1581 = vmul.f32 %v1522, 1.442695
        %v1582 = vpow.pop %v1581
        %v1583 = vmul.f32 %v1523, 1.442695
        %v1584 = vpow.pop %v1583
        %v1585 = vmul.f32 %v1524, 1.442695
        %v1586 = vpow.pop %v1585
        %v1587 = vmul.f32 %v1525, 1.442695
        %v1588 = vpow.pop %v1587
        %v1589 = vmul.f32 %v1526, 1.442695
        %v1590 = vpow.pop %v1589
        %v1591 = vadd.f32 %v1528, 1.0
        %v1592 = vadd.f32 %v1530, 1.0
        %v1593 = vadd.f32 %v1532, 1.0
        %v1594 = vadd.f32 %v1534, 1.0
        %v1595 = vadd.f32 %v1536, 1.0
        %v1596 = vadd.f32 %v1538, 1.0
        %v1597 = vadd.f32 %v1540, 1.0
        %v1598 = vadd.f32 %v1542, 1.0
        %v1599 = vadd.f32 %v1544, 1.0
        %v1600 = vadd.f32 %v1546, 1.0
        %v1601 = vadd.f32 %v1548, 1.0
        %v1602 = vadd.f32 %v1550, 1.0
        %v1603 = vadd.f32 %v1552, 1.0
        %v1604 = vadd.f32 %v1554, 1.0
        %v1605 = vadd.f32 %v1556, 1.0
        %v1606 = vadd.f32 %v1558, 1.0
        %v1607 = vadd.f32 %v1560, 1.0
        %v1608 = vadd.f32 %v1562, 1.0
        %v1609 = vadd.f32 %v1564, 1.0
        %v1610 = vadd.f32 %v1566, 1.0
        %v1611 = vadd.f32 %v1568, 1.0
        %v1612 = vadd.f32 %v1570, 1.0
        %v1613 = vadd.f32 %v1572, 1.0
        %v1614 = vadd.f32 %v1574, 1.0
        %v1615 = vadd.f32 %v1576, 1.0
        %v1616 = vadd.f32 %v1578, 1.0
        %v1617 = vadd.f32 %v1580, 1.0
        %v1618 = vadd.f32 %v1582, 1.0
        %v1619 = vadd.f32 %v1584, 1.0
        %v1620 = vadd.f32 %v1586, 1.0
        %v1621 = vadd.f32 %v1588, 1.0
        %v1622 = vadd.f32 %v1590, 1.0
        %v1623 = vrcp.pop %v1591
        %v1624 = vmul.f32 1.0, %v1623
        %v1625 = vrcp.pop %v1592
        %v1626 = vmul.f32 1.0, %v1625
        %v1627 = vrcp.pop %v1593
        %v1628 = vmul.f32 1.0, %v1627
        %v1629 = vrcp.pop %v1594
        %v1630 = vmul.f32 1.0, %v1629
        %v1631 = vrcp.pop %v1595
        %v1632 = vmul.f32 1.0, %v1631
        %v1633 = vrcp.pop %v1596
        %v1634 = vmul.f32 1.0, %v1633
        %v1635 = vrcp.pop %v1597
        %v1636 = vmul.f32 1.0, %v1635
        %v1637 = vrcp.pop %v1598
        %v1638 = vmul.f32 1.0, %v1637
        %v1639 = vrcp.pop %v1599
        %v1640 = vmul.f32 1.0, %v1639
        %v1641 = vrcp.pop %v1600
        %v1642 = vmul.f32 1.0, %v1641
        %v1643 = vrcp.pop %v1601
        %v1644 = vmul.f32 1.0, %v1643
        %v1645 = vrcp.pop %v1602
        %v1646 = vmul.f32 1.0, %v1645
        %v1647 = vrcp.pop %v1603
        %v1648 = vmul.f32 1.0, %v1647
        %v1649 = vrcp.pop %v1604
        %v1650 = vmul.f32 1.0, %v1649
        %v1651 = vrcp.pop %v1605
        %v1652 = vmul.f32 1.0, %v1651
        %v1653 = vrcp.pop %v1606
        %v1654 = vmul.f32 1.0, %v1653
        %v1655 = vrcp.pop %v1607
        %v1656 = vmul.f32 1.0, %v1655
        %v1657 = vrcp.pop %v1608
        %v1658 = vmul.f32 1.0, %v1657
        %v1659 = vrcp.pop %v1609
        %v1660 = vmul.f32 1.0, %v1659
        %v1661 = vrcp.pop %v1610
        %v1662 = vmul.f32 1.0, %v1661
        %v1663 = vrcp.pop %v1611
        %v1664 = vmul.f32 1.0, %v1663
        %v1665 = vrcp.pop %v1612
        %v1666 = vmul.f32 1.0, %v1665
        %v1667 = vrcp.pop %v1613
        %v1668 = vmul.f32 1.0, %v1667
        %v1669 = vrcp.pop %v1614
        %v1670 = vmul.f32 1.0, %v1669
        %v1671 = vrcp.pop %v1615
        %v1672 = vmul.f32 1.0, %v1671
        %v1673 = vrcp.pop %v1616
        %v1674 = vmul.f32 1.0, %v1673
        %v1675 = vrcp.pop %v1617
        %v1676 = vmul.f32 1.0, %v1675
        %v1677 = vrcp.pop %v1618
        %v1678 = vmul.f32 1.0, %v1677
        %v1679 = vrcp.pop %v1619
        %v1680 = vmul.f32 1.0, %v1679
        %v1681 = vrcp.pop %v1620
        %v1682 = vmul.f32 1.0, %v1681
        %v1683 = vrcp.pop %v1621
        %v1684 = vmul.f32 1.0, %v1683
        %v1685 = vrcp.pop %v1622
        %v1686 = vmul.f32 1.0, %v1685
        %v1687 = vmul.f32 %v1164, %v1624
        %v1688 = vmul.f32 %v1165, %v1626
        %v1689 = vmul.f32 %v1166, %v1628
        %v1690 = vmul.f32 %v1167, %v1630
        %v1691 = vmul.f32 %v1168, %v1632
        %v1692 = vmul.f32 %v1169, %v1634
        %v1693 = vmul.f32 %v1170, %v1636
        %v1694 = vmul.f32 %v1171, %v1638
        %v1695 = vmul.f32 %v1172, %v1640
        %v1696 = vmul.f32 %v1173, %v1642
        %v1697 = vmul.f32 %v1174, %v1644
        %v1698 = vmul.f32 %v1175, %v1646
        %v1699 = vmul.f32 %v1176, %v1648
        %v1700 = vmul.f32 %v1177, %v1650
        %v1701 = vmul.f32 %v1178, %v1652
        %v1702 = vmul.f32 %v1179, %v1654
        %v1703 = vmul.f32 %v1180, %v1656
        %v1704 = vmul.f32 %v1181, %v1658
        %v1705 = vmul.f32 %v1182, %v1660
        %v1706 = vmul.f32 %v1183, %v1662
        %v1707 = vmul.f32 %v1184, %v1664
        %v1708 = vmul.f32 %v1185, %v1666
        %v1709 = vmul.f32 %v1186, %v1668
        %v1710 = vmul.f32 %v1187, %v1670
        %v1711 = vmul.f32 %v1188, %v1672
        %v1712 = vmul.f32 %v1189, %v1674
        %v1713 = vmul.f32 %v1190, %v1676
        %v1714 = vmul.f32 %v1191, %v1678
        %v1715 = vmul.f32 %v1192, %v1680
        %v1716 = vmul.f32 %v1193, %v1682
        %v1717 = vmul.f32 %v1194, %v1684
        %v1718 = vmul.f32 %v1195, %v1686
        %1719 = vst [vmem:[%s296] sm:$0xff] %v1687
        %1720 = vst [vmem:[%s296 + $0x8] sm:$0xff] %v1688
        %1721 = vst [vmem:[%s296 + $0x10] sm:$0xff] %v1689
        %1722 = vst [vmem:[%s296 + $0x18] sm:$0xff] %v1690
        %1723 = vst [vmem:[%s296 + $0x20] sm:$0xff] %v1691
        %1724 = vst [vmem:[%s296 + $0x28] sm:$0xff] %v1692
        %1725 = vst [vmem:[%s296 + $0x30] sm:$0xff] %v1693
        %1726 = vst [vmem:[%s296 + $0x38] sm:$0xff] %v1694
        %1727 = vst [vmem:[%s296 + $0x40] sm:$0xff] %v1695
        %1728 = vst [vmem:[%s296 + $0x48] sm:$0xff] %v1696
        %1729 = vst [vmem:[%s296 + $0x50] sm:$0xff] %v1697
        %1730 = vst [vmem:[%s296 + $0x58] sm:$0xff] %v1698
        %1731 = vst [vmem:[%s296 + $0x60] sm:$0xff] %v1699
        %1732 = vst [vmem:[%s296 + $0x68] sm:$0xff] %v1700
        %1733 = vst [vmem:[%s296 + $0x70] sm:$0xff] %v1701
        %1734 = vst [vmem:[%s296 + $0x78] sm:$0xff] %v1702
        %1735 = vst [vmem:[%s296 + $0x80] sm:$0xff] %v1703
        %1736 = vst [vmem:[%s296 + $0x88] sm:$0xff] %v1704
        %1737 = vst [vmem:[%s296 + $0x90] sm:$0xff] %v1705
        %1738 = vst [vmem:[%s296 + $0x98] sm:$0xff] %v1706
        %1739 = vst [vmem:[%s296 + $0xa0] sm:$0xff] %v1707
        %1740 = vst [vmem:[%s296 + $0xa8] sm:$0xff] %v1708
        %1741 = vst [vmem:[%s296 + $0xb0] sm:$0xff] %v1709
        %1742 = vst [vmem:[%s296 + $0xb8] sm:$0xff] %v1710
        %1743 = vst [vmem:[%s296 + $0xc0] sm:$0xff] %v1711
        %1744 = vst [vmem:[%s296 + $0xc8] sm:$0xff] %v1712
        %1745 = vst [vmem:[%s296 + $0xd0] sm:$0xff] %v1713
        %1746 = vst [vmem:[%s296 + $0xd8] sm:$0xff] %v1714
        %1747 = vst [vmem:[%s296 + $0xe0] sm:$0xff] %v1715
        %1748 = vst [vmem:[%s296 + $0xe8] sm:$0xff] %v1716
        %1749 = vst [vmem:[%s296 + $0xf0] sm:$0xff] %v1717
        %1750 = vst [vmem:[%s296 + $0xf8] sm:$0xff] %v1718
        %s1751 = sand.u32 %s184, 1
        %s1752 = scalar_lea.sflag [#allocation4], %s1751
        %s1753 = sand.u32 %s184, 1
        %s1754 = smul.addr %s1753, 256
        %s1755 = scalar_lea.vmem [#allocation5], %s1754
        // Predicated region
        $region53: #{tpu_custom_call.1} parent=47 // pred_check
          %p1756 = pneg %p194
        $region54: #{tpu_custom_call.1} parent=47 // pred_check_branch
          %1758 = sbr.rel (%p1756) target = $region56
        $region55: #{tpu_custom_call.1} parent=47 // pred_region
          %s1760 = ssub.s32 4096, 4096
          %1761 = vsyncadd %s1752, %s1760
          %s1762 = smul.addr %s24, 32
          %s1763 = smul.addr %s1762, 128
          %s1764 = scalar_lea.hbm %s7, %s1763
          %s1765 = sshll.u32 %s1755, 4
          %s1766 = int_to_ptr.vmem [resolvable:$true] %s1765
          %1771 = dma.vmem_to_hbm [thread:$0]  %s1766, 4096, %s1764, %s1752, 256, 256, 16
        $region56: #{tpu_custom_call.1} parent=47 // pred_fallthru
          _
      $region48: #{tpu_custom_call.1} parent=5 // pred_fallthru
        _
      %p1772 = scmp.le.s32.totalorder 2, %s19
      // Predicated region
      $region57: #{tpu_custom_call.1} parent=5 // pred_check
        %p1773 = pneg %p1772
      $region58: #{tpu_custom_call.1} parent=5 // pred_check_branch
        %1775 = sbr.rel (%p1773) target = $region60
      $region59: #{tpu_custom_call.1} parent=5 // pred_region
        %s1776 = ssub.s32 %s19, 2
        // Predicated region
        $region61: #{tpu_custom_call.1} parent=59 // pred_check
          %p1777 = pneg %p200
        $region62: #{tpu_custom_call.1} parent=59 // pred_check_branch
          %1779 = sbr.rel (%p1777) target = $region64
        $region63: #{tpu_custom_call.1} parent=59 // pred_region
          %s1780 = sand.u32 %s185, 1
          %s1781 = scalar_lea.sflag [#allocation4], %s1780
          %s1782 = sand.u32 %s185, 1
          %s1783 = smul.addr %s1782, 256
          %s1784 = scalar_lea.vmem [#allocation5], %s1783
          %1785 = dma.done %s1781, 4096
        $region64: #{tpu_custom_call.1} parent=59 // pred_fallthru
          _
      $region60: #{tpu_custom_call.1} parent=5 // pred_fallthru
        _
    $region6: #{tpu_custom_call.1} parent=1 // loop_footer
      %s23 = sadd.s32 1, %s19
    $region7: #{tpu_custom_call.1} parent=1 // loop_footer_branch
      %18 = sbr.rel target = $region3
    $region8: #{tpu_custom_call.1} parent=1 // loop_exit
      _
    %1786 = vsyncpa [#allocation3], 1
    %s1787 = scalar_lea.sflag [#allocation3], 1
    %1788 = vsyncpa %s1787, 1
    %1789 = vsyncpa [#allocation4], 1
    %s1790 = scalar_lea.sflag [#allocation4], 1
    %1791 = vsyncpa %s1790, 1

</llo_original>
